<compile_context>
chip_gen: v6e
topology: v6e:2x2x1
jax: 0.10.0
libtpu: 0.0.40
codegen_flags: <defaults>
</compile_context>

<pallas_src>
import functools

import jax
import jax.numpy as jnp
from jax.experimental import pallas as pl
from jax.experimental.pallas import tpu as pltpu

NEG_SLOPE = 0.01  # torch.nn.LeakyReLU default


def _leaky(x):
    return jnp.where(x > 0, x, NEG_SLOPE * x)


def _round_up(x, m):
    return ((x + m - 1) // m) * m


def _edge_attn_kernel(an_ref, ae_ref, bn_ref, be_ref, n2e_ref, e2e_ref,
                      nemb_ref, eemb_ref, out_ref,
                      acc_n, acc_e, sum_n, sum_e, den_n, den_e,
                      *, n_key_steps, e_key_steps, total_key_steps, dn):
    f32 = jnp.float32
    k = pl.program_id(1)

    @pl.when(k == 0)
    def _():
        acc_n[...] = jnp.zeros_like(acc_n)
        acc_e[...] = jnp.zeros_like(acc_e)
        sum_n[...] = jnp.zeros_like(sum_n)
        sum_e[...] = jnp.zeros_like(sum_e)
        den_n[...] = jnp.zeros_like(den_n)
        den_e[...] = jnp.zeros_like(den_e)

    # ---------------- node -> edge branch (key axis = nodes) ----------------
    @pl.when(k < n_key_steps)
    def _():
        mask = n2e_ref[...].astype(f32)                       # int8 -> f32 in kernel
        att = _leaky(an_ref[...] + bn_ref[...])               # [tq,1] + [1,tkn]
        p = jnp.exp(att) * mask                               # masked exp
        acc_n[...] += jnp.dot(p, nemb_ref[...], preferred_element_type=f32)
        sum_n[...] += jnp.sum(p, axis=-1, keepdims=True)
        den_n[...] += jnp.sum(mask, axis=-1, keepdims=True)

    # ---------------- edge -> edge branch (key axis = edges) ----------------
    @pl.when(k < e_key_steps)
    def _():
        mask = e2e_ref[...].astype(f32)
        att = _leaky(ae_ref[...] + be_ref[...])
        p = jnp.exp(att) * mask
        acc_e[...] += jnp.dot(p, eemb_ref[...], preferred_element_type=f32)
        sum_e[...] += jnp.sum(p, axis=-1, keepdims=True)
        den_e[...] += jnp.sum(mask, axis=-1, keepdims=True)

    # ---------------- finalize: fold both normalizations into one scale -----
    @pl.when(k == total_key_steps - 1)
    def _():
        scale_n = sum_n[...] * den_n[...]                     # rowsum * denom
        inv_n = pl.reciprocal(jnp.where(scale_n == 0.0, 1.0, scale_n), approx=True)
        scale_e = sum_e[...] * den_e[...]
        inv_e = pl.reciprocal(jnp.where(scale_e == 0.0, 1.0, scale_e), approx=True)
        # Single fused output block: node half then edge half.
        out_ref[:, :dn] = _leaky(acc_n[...] * inv_n)
        out_ref[:, dn:] = _leaky(acc_e[...] * inv_e)


def edge_level_attention(node_features, edge_features,
                         edge_to_edge_adj, node_to_edge_adj,
                         weight_node, weight_edge, pv_node, pv_edge,
                         *, tq=128, tk=512):
    f32 = jnp.float32
    nf = node_features.astype(f32)
    ef = edge_features.astype(f32)
    wn = weight_node.astype(f32)
    we = weight_edge.astype(f32)
    pvn = pv_node.astype(f32)
    pve = pv_edge.astype(f32)

    N, _ = nf.shape
    E, _ = ef.shape
    Dn = wn.shape[1]
    De = we.shape[1]

    # Adjacency streamed as int8 0/1 masks (4x less DMA than f32).
    n2e = (node_to_edge_adj != 0).astype(jnp.int8)
    e2e = (edge_to_edge_adj != 0).astype(jnp.int8)

    # Grid-invariant projections done once in the wrapper (not per grid step).
    node_embeds = nf @ wn                                      # [N, Dn]
    edge_embeds = ef @ we                                      # [E, De]
    a_n = (edge_embeds @ pvn[:De]).reshape(E, 1)               # query-side columns
    a_e = (edge_embeds @ pve[:De]).reshape(E, 1)
    b_n = (node_embeds @ pvn[De:]).reshape(1, N)               # key-side rows
    b_e = (edge_embeds @ pve[De:]).reshape(1, E)

    # ---- tiling: pad query rows to a multiple of tq (int8 needs tq % 32 == 0)
    tq_eff = max(32, (tq // 32) * 32)
    Eq = _round_up(E, tq_eff)

    # ---- key-axis tiling (multiple of 128 lanes, or the full dim if small)
    tk_eff = max(128, (tk // 128) * 128)
    if N <= tk_eff:
        tkn, Kn, Nk = N, 1, N
    else:
        tkn, Kn = tk_eff, pl.cdiv(N, tk_eff)
        Nk = Kn * tkn
    if E <= tk_eff:
        tke, Ke, Ek = E, 1, E
    else:
        tke, Ke = tk_eff, pl.cdiv(E, tk_eff)
        Ek = Ke * tke
    K = max(Kn, Ke)

    def pad2(x, r, c):
        return jnp.pad(x, ((0, r - x.shape[0]), (0, c - x.shape[1])))

    a_n_p = pad2(a_n, Eq, 1)
    a_e_p = pad2(a_e, Eq, 1)
    b_n_p = pad2(b_n, 1, Nk)
    b_e_p = pad2(b_e, 1, Ek)
    n2e_p = pad2(n2e, Eq, Nk)
    e2e_p = pad2(e2e, Eq, Ek)
    nemb_p = pad2(node_embeds, Nk, Dn)
    eemb_p = pad2(edge_embeds, Ek, De)

    grid = (Eq // tq_eff, K)

    # Index maps: query-tiled, key-tiled (clamped per branch), grid-invariant.
    def q_idx(q, k): return (q, 0)
    def n_adj(q, k): return (q, jnp.minimum(k, Kn - 1))
    def e_adj(q, k): return (q, jnp.minimum(k, Ke - 1))
    def n_row(q, k): return (0, jnp.minimum(k, Kn - 1))
    def e_row(q, k): return (0, jnp.minimum(k, Ke - 1))
    def n_emb(q, k): return (jnp.minimum(k, Kn - 1), 0)
    def e_emb(q, k): return (jnp.minimum(k, Ke - 1), 0)

    kernel = functools.partial(_edge_attn_kernel,
                               n_key_steps=Kn, e_key_steps=Ke,
                               total_key_steps=K, dn=Dn)

    out = pl.pallas_call(
        kernel,
        out_shape=jax.ShapeDtypeStruct((Eq, Dn + De), f32),
        grid=grid,
        in_specs=[
            pl.BlockSpec((tq_eff, 1), q_idx),      # a_n   (query column, node branch)
            pl.BlockSpec((tq_eff, 1), q_idx),      # a_e   (query column, edge branch)
            pl.BlockSpec((1, tkn), n_row),         # b_n   (key row terms, nodes)
            pl.BlockSpec((1, tke), e_row),         # b_e   (key row terms, edges)
            pl.BlockSpec((tq_eff, tkn), n_adj),    # node_to_edge adjacency (int8)
            pl.BlockSpec((tq_eff, tke), e_adj),    # edge_to_edge adjacency (int8)
            pl.BlockSpec((tkn, Dn), n_emb),        # node embeddings (key side)
            pl.BlockSpec((tke, De), e_emb),        # edge embeddings (key side)
        ],
        out_specs=pl.BlockSpec((tq_eff, Dn + De), q_idx),
        scratch_shapes=[
            pltpu.VMEM((tq_eff, Dn), f32),         # acc_n
            pltpu.VMEM((tq_eff, De), f32),         # acc_e
            pltpu.VMEM((tq_eff, 1), f32),          # sum_n
            pltpu.VMEM((tq_eff, 1), f32),          # sum_e
            pltpu.VMEM((tq_eff, 1), f32),          # den_n
            pltpu.VMEM((tq_eff, 1), f32),          # den_e
        ],
        compiler_params=pltpu.CompilerParams(
            dimension_semantics=("parallel", "arbitrary"),
            vmem_limit_bytes=64 * 1024 * 1024),
    )(a_n_p, a_e_p, b_n_p, b_e_p, n2e_p, e2e_p, nemb_p, eemb_p)

    return out[:E]


def reference(node_features, edge_features, e2e, n2e,
              weight_node, weight_edge, pv_node, pv_edge):
    """Plain-JAX mirror of the PyTorch forward (for validation)."""
    e2e = e2e.astype(jnp.float32)
    n2e = n2e.astype(jnp.float32)
    de = weight_edge.shape[1]
    node_embeds = node_features @ weight_node                        # [N, Dn]
    edge_embeds = edge_features @ weight_edge                        # [E, De]

    att_n = _leaky(edge_embeds @ pv_node[:de].reshape(-1, 1)
                   + (node_embeds @ pv_node[de:]).reshape(1, -1))    # [E, N]
    exp_n = jnp.exp(att_n)
    imp_n = jnp.nan_to_num(exp_n / jnp.sum(exp_n * n2e, axis=1, keepdims=True) * n2e)
    final_n = jnp.nan_to_num((imp_n @ node_embeds)
                             / jnp.sum(n2e, axis=1, keepdims=True))
    out_nodes = _leaky(final_n)

    att_e = _leaky(edge_embeds @ pv_edge[:de].reshape(-1, 1)
                   + (edge_embeds @ pv_edge[de:]).reshape(1, -1))    # [E, E]
    exp_e = jnp.exp(att_e)
    imp_e = jnp.nan_to_num(exp_e / jnp.sum(exp_e * e2e, axis=1, keepdims=True) * e2e)
    final_e = jnp.nan_to_num((imp_e @ edge_embeds)
                             / jnp.sum(e2e, axis=1, keepdims=True))
    out_edges = _leaky(final_e)
    return jnp.concatenate([out_nodes, out_edges], axis=1)


if __name__ == "__main__":
    # Small synthetic graph: N nodes, E edges.
    N, E = 48, 150
    Fn, Fe = 8, 12          # node / edge feature sizes
    Dn, De = 32, 32         # node / edge embedding sizes

    key = jax.random.PRNGKey(0)
    ks = jax.random.split(key, 8)

    node_features = jax.random.normal(ks[0], (N, Fn), jnp.float32)
    edge_features = jax.random.normal(ks[1], (E, Fe), jnp.float32)
    # Adjacency provided directly as int8 0/1 masks (streamed as-is).
    e2e_adj = (jax.random.uniform(ks[2], (E, E)) > 0.5).astype(jnp.int8)
    n2e_adj = (jax.random.uniform(ks[3], (E, N)) > 0.5).astype(jnp.int8)

    # Deterministic parameter init (matching the module's __init__ shapes):
    #   xavier_uniform for the weight matrices, normal(0,1) for the vectors.
    bound_n = (6.0 / (Fn + Dn)) ** 0.5
    bound_e = (6.0 / (Fe + De)) ** 0.5
    weight_node = jax.random.uniform(ks[4], (Fn, Dn), jnp.float32, -bound_n, bound_n)
    weight_edge = jax.random.uniform(ks[5], (Fe, De), jnp.float32, -bound_e, bound_e)
    pv_node = jax.random.normal(ks[6], (De + Dn,), jnp.float32)   # parameter_vector_node
    pv_edge = jax.random.normal(ks[7], (2 * De,), jnp.float32)    # parameter_vector_edge

    # tq=32, tk=128 exercise: padded query rows (150 -> 160), a 5x2 grid,
    # key-axis tiling of the edge branch (Ke=2) and the clamped node branch
    # (Kn=1 < K), all at small demo shapes.
    out = edge_level_attention(node_features, edge_features, e2e_adj, n2e_adj,
                               weight_node, weight_edge, pv_node, pv_edge,
                               tq=32, tk=128)
    out = jax.block_until_ready(out)

    ref = reference(node_features, edge_features, e2e_adj, n2e_adj,
                    weight_node, weight_edge, pv_node, pv_edge)

    assert out.shape == (E, Dn + De), out.shape
    # Tolerance slightly looser than pure-f32 because of the EUP approximate
    # reciprocal used for the fused rowsum*denominator normalization.
    err = jnp.max(jnp.abs(out - ref))
    assert jnp.allclose(out, ref, atol=2e-3, rtol=2e-3), f"max abs err {err}"
    print("KERNEL_OK")
</pallas_src>

<mosaic_0001>
module attributes {stable_mosaic.version = 11 : i64} {
  func.func @_edge_attn_kernel(%arg0: i32, %arg1: i32, %arg2: memref<32x1xf32, #tpu.memory_space<vmem>>, %arg3: memref<32x1xf32, #tpu.memory_space<vmem>>, %arg4: memref<1x48xf32, #tpu.memory_space<vmem>>, %arg5: memref<1x128xf32, #tpu.memory_space<vmem>>, %arg6: memref<32x48xi8, #tpu.memory_space<vmem>>, %arg7: memref<32x128xi8, #tpu.memory_space<vmem>>, %arg8: memref<48x32xf32, #tpu.memory_space<vmem>>, %arg9: memref<128x32xf32, #tpu.memory_space<vmem>>, %arg10: memref<32x64xf32, #tpu.memory_space<vmem>>, %arg11: memref<32x32xf32, #tpu.memory_space<vmem>>, %arg12: memref<32x32xf32, #tpu.memory_space<vmem>>, %arg13: memref<32x1xf32, #tpu.memory_space<vmem>>, %arg14: memref<32x1xf32, #tpu.memory_space<vmem>>, %arg15: memref<32x1xf32, #tpu.memory_space<vmem>>, %arg16: memref<32x1xf32, #tpu.memory_space<vmem>>) attributes {dimension_semantics = [#tpu.dimension_semantics<parallel>, #tpu.dimension_semantics<arbitrary>], iteration_bounds = array<i64: 5, 2>, scalar_prefetch = 0 : i64, scratch_operands = 6 : i64, tpu.core_type = #tpu.core_type<tc>, window_params = [{transform_indices = @transform_0, window_bounds = array<i64: 32, 1>}, {transform_indices = @transform_1, window_bounds = array<i64: 32, 1>}, {transform_indices = @transform_2, window_bounds = array<i64: 1, 48>}, {transform_indices = @transform_3, window_bounds = array<i64: 1, 128>}, {transform_indices = @transform_4, window_bounds = array<i64: 32, 48>}, {transform_indices = @transform_5, window_bounds = array<i64: 32, 128>}, {transform_indices = @transform_6, window_bounds = array<i64: 48, 32>}, {transform_indices = @transform_7, window_bounds = array<i64: 128, 32>}, {transform_indices = @transform_8, window_bounds = array<i64: 32, 64>}]} {
    %c0_i32 = arith.constant 0 : i32
    %0 = arith.cmpi eq, %arg1, %c0_i32 : i32
    %1 = arith.extui %0 : i1 to i32
    %c0_i32_0 = arith.constant 0 : i32
    %2 = arith.cmpi ne, %1, %c0_i32_0 : i32
    scf.if %2 {
      %cst = arith.constant 0.000000e+00 : f32
      %12 = vector.broadcast %cst : f32 to vector<32x32xf32>
      %c0 = arith.constant 0 : index
      %c0_5 = arith.constant 0 : index
      %13 = vector.load %arg11[%c0, %c0_5] : memref<32x32xf32, #tpu.memory_space<vmem>>, vector<32x32xf32>
      tpu.vector_store %arg11[%c0, %c0_5], %12 {strides = array<i32>} : memref<32x32xf32, #tpu.memory_space<vmem>>, vector<32x32xf32>,
      %cst_6 = arith.constant 0.000000e+00 : f32
      %14 = vector.broadcast %cst_6 : f32 to vector<32x32xf32>
      %c0_7 = arith.constant 0 : index
      %c0_8 = arith.constant 0 : index
      %15 = vector.load %arg12[%c0_7, %c0_8] : memref<32x32xf32, #tpu.memory_space<vmem>>, vector<32x32xf32>
      tpu.vector_store %arg12[%c0_7, %c0_8], %14 {strides = array<i32>} : memref<32x32xf32, #tpu.memory_space<vmem>>, vector<32x32xf32>,
      %cst_9 = arith.constant 0.000000e+00 : f32
      %16 = vector.broadcast %cst_9 : f32 to vector<32x1xf32>
      %c0_10 = arith.constant 0 : index
      %c0_11 = arith.constant 0 : index
      %17 = vector.load %arg13[%c0_10, %c0_11] : memref<32x1xf32, #tpu.memory_space<vmem>>, vector<32x1xf32>
      tpu.vector_store %arg13[%c0_10, %c0_11], %16 {strides = array<i32>} : memref<32x1xf32, #tpu.memory_space<vmem>>, vector<32x1xf32>,
      %cst_12 = arith.constant 0.000000e+00 : f32
      %18 = vector.broadcast %cst_12 : f32 to vector<32x1xf32>
      %c0_13 = arith.constant 0 : index
      %c0_14 = arith.constant 0 : index
      %19 = vector.load %arg14[%c0_13, %c0_14] : memref<32x1xf32, #tpu.memory_space<vmem>>, vector<32x1xf32>
      tpu.vector_store %arg14[%c0_13, %c0_14], %18 {strides = array<i32>} : memref<32x1xf32, #tpu.memory_space<vmem>>, vector<32x1xf32>,
      %cst_15 = arith.constant 0.000000e+00 : f32
      %20 = vector.broadcast %cst_15 : f32 to vector<32x1xf32>
      %c0_16 = arith.constant 0 : index
      %c0_17 = arith.constant 0 : index
      %21 = vector.load %arg15[%c0_16, %c0_17] : memref<32x1xf32, #tpu.memory_space<vmem>>, vector<32x1xf32>
      tpu.vector_store %arg15[%c0_16, %c0_17], %20 {strides = array<i32>} : memref<32x1xf32, #tpu.memory_space<vmem>>, vector<32x1xf32>,
      %cst_18 = arith.constant 0.000000e+00 : f32
      %22 = vector.broadcast %cst_18 : f32 to vector<32x1xf32>
      %c0_19 = arith.constant 0 : index
      %c0_20 = arith.constant 0 : index
      %23 = vector.load %arg16[%c0_19, %c0_20] : memref<32x1xf32, #tpu.memory_space<vmem>>, vector<32x1xf32>
      tpu.vector_store %arg16[%c0_19, %c0_20], %22 {strides = array<i32>} : memref<32x1xf32, #tpu.memory_space<vmem>>, vector<32x1xf32>,
    } else {
    }
    %c1_i32 = arith.constant 1 : i32
    %3 = arith.cmpi slt, %arg1, %c1_i32 : i32
    %4 = arith.extui %3 : i1 to i32
    %c0_i32_1 = arith.constant 0 : i32
    %5 = arith.cmpi ne, %4, %c0_i32_1 : i32
    scf.if %5 {
      %c0 = arith.constant 0 : index
      %c0_5 = arith.constant 0 : index
      %12 = vector.load %arg6[%c0, %c0_5] : memref<32x48xi8, #tpu.memory_space<vmem>>, vector<32x48xi8>
      %13 = arith.sitofp %12 : vector<32x48xi8> to vector<32x48xf32>
      %c0_6 = arith.constant 0 : index
      %c0_7 = arith.constant 0 : index
      %14 = vector.load %arg2[%c0_6, %c0_7] : memref<32x1xf32, #tpu.memory_space<vmem>>, vector<32x1xf32>
      %c0_8 = arith.constant 0 : index
      %c0_9 = arith.constant 0 : index
      %15 = vector.load %arg4[%c0_8, %c0_9] : memref<1x48xf32, #tpu.memory_space<vmem>>, vector<1x48xf32>
      %16 = vector.broadcast %14 : vector<32x1xf32> to vector<32x48xf32>
      %17 = vector.broadcast %15 : vector<1x48xf32> to vector<32x48xf32>
      %18 = arith.addf %16, %17 : vector<32x48xf32>
      %cst = arith.constant 0.000000e+00 : f32
      %19 = vector.broadcast %cst : f32 to vector<32x48xf32>
      %20 = arith.cmpf ogt, %18, %19 : vector<32x48xf32>
      %cst_10 = arith.constant 0.00999999977 : f32
      %21 = vector.broadcast %cst_10 : f32 to vector<32x48xf32>
      %22 = arith.mulf %21, %18 : vector<32x48xf32>
      %23 = arith.select %20, %18, %22 : vector<32x48xi1>, vector<32x48xf32>
      %24 = math.exp %23 : vector<32x48xf32>
      %25 = arith.mulf %24, %13 : vector<32x48xf32>
      %c0_11 = arith.constant 0 : index
      %c0_12 = arith.constant 0 : index
      %26 = vector.load %arg11[%c0_11, %c0_12] : memref<32x32xf32, #tpu.memory_space<vmem>>, vector<32x32xf32>
      %c0_13 = arith.constant 0 : index
      %c0_14 = arith.constant 0 : index
      %27 = vector.load %arg8[%c0_13, %c0_14] : memref<48x32xf32, #tpu.memory_space<vmem>>, vector<48x32xf32>
      %cst_15 = arith.constant dense<0.000000e+00> : vector<32x32xf32>
      %28 = tpu.matmul %25, %27, %cst_15 {dimension_numbers = #tpu.dot_dimension_numbers<[1], [0], [0], [1], [0, 0, 1, 1], [], []>} : vector<32x48xf32>, vector<48x32xf32>, vector<32x32xf32> -> vector<32x32xf32>
      %29 = arith.addf %26, %28 : vector<32x32xf32>
      %c0_16 = arith.constant 0 : index
      %c0_17 = arith.constant 0 : index
      %30 = vector.load %arg11[%c0_16, %c0_17] : memref<32x32xf32, #tpu.memory_space<vmem>>, vector<32x32xf32>
      tpu.vector_store %arg11[%c0_16, %c0_17], %29 {strides = array<i32>} : memref<32x32xf32, #tpu.memory_space<vmem>>, vector<32x32xf32>,
      %c0_18 = arith.constant 0 : index
      %c0_19 = arith.constant 0 : index
      %31 = vector.load %arg13[%c0_18, %c0_19] : memref<32x1xf32, #tpu.memory_space<vmem>>, vector<32x1xf32>
      %cst_20 = arith.constant dense<0.000000e+00> : vector<32xf32>
      %32 = vector.multi_reduction <add>, %25, %cst_20 [1] : vector<32x48xf32> to vector<32xf32>
      %33 = vector.shape_cast %32 : vector<32xf32> to vector<32x1xf32>
      %34 = arith.addf %31, %33 : vector<32x1xf32>
      %c0_21 = arith.constant 0 : index
      %c0_22 = arith.constant 0 : index
      %35 = vector.load %arg13[%c0_21, %c0_22] : memref<32x1xf32, #tpu.memory_space<vmem>>, vector<32x1xf32>
      tpu.vector_store %arg13[%c0_21, %c0_22], %34 {strides = array<i32>} : memref<32x1xf32, #tpu.memory_space<vmem>>, vector<32x1xf32>,
      %c0_23 = arith.constant 0 : index
      %c0_24 = arith.constant 0 : index
      %36 = vector.load %arg15[%c0_23, %c0_24] : memref<32x1xf32, #tpu.memory_space<vmem>>, vector<32x1xf32>
      %cst_25 = arith.constant dense<0.000000e+00> : vector<32xf32>
      %37 = vector.multi_reduction <add>, %13, %cst_25 [1] : vector<32x48xf32> to vector<32xf32>
      %38 = vector.shape_cast %37 : vector<32xf32> to vector<32x1xf32>
      %39 = arith.addf %36, %38 : vector<32x1xf32>
      %c0_26 = arith.constant 0 : index
      %c0_27 = arith.constant 0 : index
      %40 = vector.load %arg15[%c0_26, %c0_27] : memref<32x1xf32, #tpu.memory_space<vmem>>, vector<32x1xf32>
      tpu.vector_store %arg15[%c0_26, %c0_27], %39 {strides = array<i32>} : memref<32x1xf32, #tpu.memory_space<vmem>>, vector<32x1xf32>,
    } else {
    }
    %c2_i32 = arith.constant 2 : i32
    %6 = arith.cmpi slt, %arg1, %c2_i32 : i32
    %7 = arith.extui %6 : i1 to i32
    %c0_i32_2 = arith.constant 0 : i32
    %8 = arith.cmpi ne, %7, %c0_i32_2 : i32
    scf.if %8 {
      %c0 = arith.constant 0 : index
      %c0_5 = arith.constant 0 : index
      %12 = vector.load %arg7[%c0, %c0_5] : memref<32x128xi8, #tpu.memory_space<vmem>>, vector<32x128xi8>
      %13 = arith.sitofp %12 : vector<32x128xi8> to vector<32x128xf32>
      %c0_6 = arith.constant 0 : index
      %c0_7 = arith.constant 0 : index
      %14 = vector.load %arg3[%c0_6, %c0_7] : memref<32x1xf32, #tpu.memory_space<vmem>>, vector<32x1xf32>
      %c0_8 = arith.constant 0 : index
      %c0_9 = arith.constant 0 : index
      %15 = vector.load %arg5[%c0_8, %c0_9] : memref<1x128xf32, #tpu.memory_space<vmem>>, vector<1x128xf32>
      %16 = vector.broadcast %14 : vector<32x1xf32> to vector<32x128xf32>
      %17 = vector.broadcast %15 : vector<1x128xf32> to vector<32x128xf32>
      %18 = arith.addf %16, %17 : vector<32x128xf32>
      %cst = arith.constant 0.000000e+00 : f32
      %19 = vector.broadcast %cst : f32 to vector<32x128xf32>
      %20 = arith.cmpf ogt, %18, %19 : vector<32x128xf32>
      %cst_10 = arith.constant 0.00999999977 : f32
      %21 = vector.broadcast %cst_10 : f32 to vector<32x128xf32>
      %22 = arith.mulf %21, %18 : vector<32x128xf32>
      %23 = arith.select %20, %18, %22 : vector<32x128xi1>, vector<32x128xf32>
      %24 = math.exp %23 : vector<32x128xf32>
      %25 = arith.mulf %24, %13 : vector<32x128xf32>
      %c0_11 = arith.constant 0 : index
      %c0_12 = arith.constant 0 : index
      %26 = vector.load %arg12[%c0_11, %c0_12] : memref<32x32xf32, #tpu.memory_space<vmem>>, vector<32x32xf32>
      %c0_13 = arith.constant 0 : index
      %c0_14 = arith.constant 0 : index
      %27 = vector.load %arg9[%c0_13, %c0_14] : memref<128x32xf32, #tpu.memory_space<vmem>>, vector<128x32xf32>
      %cst_15 = arith.constant dense<0.000000e+00> : vector<32x32xf32>
      %28 = tpu.matmul %25, %27, %cst_15 {dimension_numbers = #tpu.dot_dimension_numbers<[1], [0], [0], [1], [0, 0, 1, 1], [], []>} : vector<32x128xf32>, vector<128x32xf32>, vector<32x32xf32> -> vector<32x32xf32>
      %29 = arith.addf %26, %28 : vector<32x32xf32>
      %c0_16 = arith.constant 0 : index
      %c0_17 = arith.constant 0 : index
      %30 = vector.load %arg12[%c0_16, %c0_17] : memref<32x32xf32, #tpu.memory_space<vmem>>, vector<32x32xf32>
      tpu.vector_store %arg12[%c0_16, %c0_17], %29 {strides = array<i32>} : memref<32x32xf32, #tpu.memory_space<vmem>>, vector<32x32xf32>,
      %c0_18 = arith.constant 0 : index
      %c0_19 = arith.constant 0 : index
      %31 = vector.load %arg14[%c0_18, %c0_19] : memref<32x1xf32, #tpu.memory_space<vmem>>, vector<32x1xf32>
      %cst_20 = arith.constant dense<0.000000e+00> : vector<32xf32>
      %32 = vector.multi_reduction <add>, %25, %cst_20 [1] : vector<32x128xf32> to vector<32xf32>
      %33 = vector.shape_cast %32 : vector<32xf32> to vector<32x1xf32>
      %34 = arith.addf %31, %33 : vector<32x1xf32>
      %c0_21 = arith.constant 0 : index
      %c0_22 = arith.constant 0 : index
      %35 = vector.load %arg14[%c0_21, %c0_22] : memref<32x1xf32, #tpu.memory_space<vmem>>, vector<32x1xf32>
      tpu.vector_store %arg14[%c0_21, %c0_22], %34 {strides = array<i32>} : memref<32x1xf32, #tpu.memory_space<vmem>>, vector<32x1xf32>,
      %c0_23 = arith.constant 0 : index
      %c0_24 = arith.constant 0 : index
      %36 = vector.load %arg16[%c0_23, %c0_24] : memref<32x1xf32, #tpu.memory_space<vmem>>, vector<32x1xf32>
      %cst_25 = arith.constant dense<0.000000e+00> : vector<32xf32>
      %37 = vector.multi_reduction <add>, %13, %cst_25 [1] : vector<32x128xf32> to vector<32xf32>
      %38 = vector.shape_cast %37 : vector<32xf32> to vector<32x1xf32>
      %39 = arith.addf %36, %38 : vector<32x1xf32>
      %c0_26 = arith.constant 0 : index
      %c0_27 = arith.constant 0 : index
      %40 = vector.load %arg16[%c0_26, %c0_27] : memref<32x1xf32, #tpu.memory_space<vmem>>, vector<32x1xf32>
      tpu.vector_store %arg16[%c0_26, %c0_27], %39 {strides = array<i32>} : memref<32x1xf32, #tpu.memory_space<vmem>>, vector<32x1xf32>,
    } else {
    }
    %c1_i32_3 = arith.constant 1 : i32
    %9 = arith.cmpi eq, %arg1, %c1_i32_3 : i32
    %10 = arith.extui %9 : i1 to i32
    %c0_i32_4 = arith.constant 0 : i32
    %11 = arith.cmpi ne, %10, %c0_i32_4 : i32
    scf.if %11 {
      %c0 = arith.constant 0 : index
      %c0_5 = arith.constant 0 : index
      %12 = vector.load %arg13[%c0, %c0_5] : memref<32x1xf32, #tpu.memory_space<vmem>>, vector<32x1xf32>
      %c0_6 = arith.constant 0 : index
      %c0_7 = arith.constant 0 : index
      %13 = vector.load %arg15[%c0_6, %c0_7] : memref<32x1xf32, #tpu.memory_space<vmem>>, vector<32x1xf32>
      %14 = arith.mulf %12, %13 : vector<32x1xf32>
      %cst = arith.constant 0.000000e+00 : f32
      %15 = vector.broadcast %cst : f32 to vector<32x1xf32>
      %16 = arith.cmpf oeq, %14, %15 : vector<32x1xf32>
      %cst_8 = arith.constant 1.000000e+00 : f32
      %17 = vector.broadcast %cst_8 : f32 to vector<32x1xf32>
      %18 = arith.select %16, %17, %14 : vector<32x1xi1>, vector<32x1xf32>
      %19 = tpu.reciprocal %18 {approx = true} : vector<32x1xf32> -> vector<32x1xf32>
      %c0_9 = arith.constant 0 : index
      %c0_10 = arith.constant 0 : index
      %20 = vector.load %arg14[%c0_9, %c0_10] : memref<32x1xf32, #tpu.memory_space<vmem>>, vector<32x1xf32>
      %c0_11 = arith.constant 0 : index
      %c0_12 = arith.constant 0 : index
      %21 = vector.load %arg16[%c0_11, %c0_12] : memref<32x1xf32, #tpu.memory_space<vmem>>, vector<32x1xf32>
      %22 = arith.mulf %20, %21 : vector<32x1xf32>
      %cst_13 = arith.constant 0.000000e+00 : f32
      %23 = vector.broadcast %cst_13 : f32 to vector<32x1xf32>
      %24 = arith.cmpf oeq, %22, %23 : vector<32x1xf32>
      %cst_14 = arith.constant 1.000000e+00 : f32
      %25 = vector.broadcast %cst_14 : f32 to vector<32x1xf32>
      %26 = arith.select %24, %25, %22 : vector<32x1xi1>, vector<32x1xf32>
      %27 = tpu.reciprocal %26 {approx = true} : vector<32x1xf32> -> vector<32x1xf32>
      %c0_15 = arith.constant 0 : index
      %c0_16 = arith.constant 0 : index
      %28 = vector.load %arg11[%c0_15, %c0_16] : memref<32x32xf32, #tpu.memory_space<vmem>>, vector<32x32xf32>
      %29 = vector.broadcast %19 : vector<32x1xf32> to vector<32x32xf32>
      %30 = arith.mulf %28, %29 : vector<32x32xf32>
      %cst_17 = arith.constant 0.000000e+00 : f32
      %31 = vector.broadcast %cst_17 : f32 to vector<32x32xf32>
      %32 = arith.cmpf ogt, %30, %31 : vector<32x32xf32>
      %cst_18 = arith.constant 0.00999999977 : f32
      %33 = vector.broadcast %cst_18 : f32 to vector<32x32xf32>
      %34 = arith.mulf %33, %30 : vector<32x32xf32>
      %35 = arith.select %32, %30, %34 : vector<32x32xi1>, vector<32x32xf32>
      %c0_19 = arith.constant 0 : index
      %c0_20 = arith.constant 0 : index
      %36 = vector.load %arg10[%c0_19, %c0_20] : memref<32x64xf32, #tpu.memory_space<vmem>>, vector<32x32xf32>
      tpu.vector_store %arg10[%c0_19, %c0_20], %35 {strides = array<i32>} : memref<32x64xf32, #tpu.memory_space<vmem>>, vector<32x32xf32>,
      %c0_21 = arith.constant 0 : index
      %c0_22 = arith.constant 0 : index
      %37 = vector.load %arg12[%c0_21, %c0_22] : memref<32x32xf32, #tpu.memory_space<vmem>>, vector<32x32xf32>
      %38 = vector.broadcast %27 : vector<32x1xf32> to vector<32x32xf32>
      %39 = arith.mulf %37, %38 : vector<32x32xf32>
      %cst_23 = arith.constant 0.000000e+00 : f32
      %40 = vector.broadcast %cst_23 : f32 to vector<32x32xf32>
      %41 = arith.cmpf ogt, %39, %40 : vector<32x32xf32>
      %cst_24 = arith.constant 0.00999999977 : f32
      %42 = vector.broadcast %cst_24 : f32 to vector<32x32xf32>
      %43 = arith.mulf %42, %39 : vector<32x32xf32>
      %44 = arith.select %41, %39, %43 : vector<32x32xi1>, vector<32x32xf32>
      %c0_25 = arith.constant 0 : index
      %c32 = arith.constant 32 : index
      %45 = vector.load %arg10[%c0_25, %c32] : memref<32x64xf32, #tpu.memory_space<vmem>>, vector<32x32xf32>
      tpu.vector_store %arg10[%c0_25, %c32], %44 {strides = array<i32>} : memref<32x64xf32, #tpu.memory_space<vmem>>, vector<32x32xf32>,
    } else {
    }
    return
  }
  func.func @transform_0(%arg0: i32, %arg1: i32) -> (i32, i32) {
    %c0_i32 = arith.constant 0 : i32
    %c0_i32_0 = arith.constant 0 : i32
    return %arg0, %c0_i32 : i32, i32
  }
  func.func @transform_1(%arg0: i32, %arg1: i32) -> (i32, i32) {
    %c0_i32 = arith.constant 0 : i32
    %c0_i32_0 = arith.constant 0 : i32
    return %arg0, %c0_i32 : i32, i32
  }
  func.func @transform_2(%arg0: i32, %arg1: i32) -> (i32, i32) {
    %c0_i32 = arith.constant 0 : i32
    %0 = arith.minsi %arg1, %c0_i32 : i32
    %c0_i32_0 = arith.constant 0 : i32
    %c0_i32_1 = arith.constant 0 : i32
    return %c0_i32_0, %0 : i32, i32
  }
  func.func @transform_3(%arg0: i32, %arg1: i32) -> (i32, i32) {
    %c1_i32 = arith.constant 1 : i32
    %0 = arith.minsi %arg1, %c1_i32 : i32
    %c0_i32 = arith.constant 0 : i32
    %c0_i32_0 = arith.constant 0 : i32
    return %c0_i32, %0 : i32, i32
  }
  func.func @transform_4(%arg0: i32, %arg1: i32) -> (i32, i32) {
    %c0_i32 = arith.constant 0 : i32
    %0 = arith.minsi %arg1, %c0_i32 : i32
    %c0_i32_0 = arith.constant 0 : i32
    return %arg0, %0 : i32, i32
  }
  func.func @transform_5(%arg0: i32, %arg1: i32) -> (i32, i32) {
    %c1_i32 = arith.constant 1 : i32
    %0 = arith.minsi %arg1, %c1_i32 : i32
    %c0_i32 = arith.constant 0 : i32
    return %arg0, %0 : i32, i32
  }
  func.func @transform_6(%arg0: i32, %arg1: i32) -> (i32, i32) {
    %c0_i32 = arith.constant 0 : i32
    %0 = arith.minsi %arg1, %c0_i32 : i32
    %c0_i32_0 = arith.constant 0 : i32
    %c0_i32_1 = arith.constant 0 : i32
    return %0, %c0_i32_0 : i32, i32
  }
  func.func @transform_7(%arg0: i32, %arg1: i32) -> (i32, i32) {
    %c1_i32 = arith.constant 1 : i32
    %0 = arith.minsi %arg1, %c1_i32 : i32
    %c0_i32 = arith.constant 0 : i32
    %c0_i32_0 = arith.constant 0 : i32
    return %0, %c0_i32 : i32, i32
  }
  func.func @transform_8(%arg0: i32, %arg1: i32) -> (i32, i32) {
    %c0_i32 = arith.constant 0 : i32
    %c0_i32_0 = arith.constant 0 : i32
    return %arg0, %c0_i32 : i32, i32
  }
}

</mosaic_0001>

<llo_original>
// kernel: tpu_custom_call.1
$region0: #{tpu_custom_call.1}
  #allocation0 [shape = 'u32[]', space=smem, size = 0x4, offset = 0x4, fixed_abs, tag = 'smem constant byte address 0x4 - core index']
  #allocation1 [shape = 'u32[144,128]{1,0:T(1,128)}', space=vmem, size = 0x12000, scoped, tag = 'internal scratch']
  #allocation2 [shape = 'f32[32,32]{1,0:T(8,128)}', space=vmem, size = 0x4000, scoped, tag = 'scratch operand']
  #allocation3 [shape = 'f32[32,32]{1,0:T(8,128)}', space=vmem, size = 0x4000, scoped, tag = 'scratch operand']
  #allocation4 [shape = 'f32[32,1]{1,0:T(8,128)}', space=vmem, size = 0x4000, scoped, tag = 'scratch operand']
  #allocation5 [shape = 'f32[32,1]{1,0:T(8,128)}', space=vmem, size = 0x4000, scoped, tag = 'scratch operand']
  #allocation6 [shape = 'f32[32,1]{1,0:T(8,128)}', space=vmem, size = 0x4000, scoped, tag = 'scratch operand']
  #allocation7 [shape = 'f32[32,1]{1,0:T(8,128)}', space=vmem, size = 0x4000, scoped, tag = 'scratch operand']
  %s0 = inlined_call_operand.vmem [shape: f32[160,1], index: 0, kind: input, shape index: {}]
  %s1 = inlined_call_operand.vmem [shape: f32[160,1], index: 1, kind: input, shape index: {}]
  %s2 = inlined_call_operand.vmem [shape: f32[1,48], index: 2, kind: input, shape index: {}]
  %s3 = inlined_call_operand.vmem [shape: f32[1,256], index: 3, kind: input, shape index: {}]
  %s4 = inlined_call_operand.vmem [shape: s8[160,48], index: 4, kind: input, shape index: {}]
  %s5 = inlined_call_operand.vmem [shape: s8[160,256], index: 5, kind: input, shape index: {}]
  %s6 = inlined_call_operand.vmem [shape: f32[48,32], index: 6, kind: input, shape index: {}]
  %s7 = inlined_call_operand.vmem [shape: f32[256,32], index: 7, kind: input, shape index: {}]
  %s8 = inlined_call_operand.vmem [shape: f32[160,64], index: 8, kind: output, shape index: {}]
  %s9 = sld [smem:[#allocation0]]
  $region81: #{tpu_custom_call.1} parent=0
    _
  %s11 = ssub.s32 1, %s9
  %s12 = scalar_select 0, %s11, %s9
  loop: start=0, step=1, limit=12
  $region2: #{tpu_custom_call.1} parent=0 // loop_pre_header
    _
  $region3: #{tpu_custom_call.1} parent=0 // loop_header
    %s14 = sphi 0, %s18
    %p15 = scmp.ge.s32.totalorder %s14, 12
    %s21 = sphi 0, %s33
    %s22 = sphi 0, %s29
    %s23 = sphi 0, %s21
    %s24 = sphi 0, %s22
    %s25 = sphi 0, %s23
    %s26 = sphi 0, %s24
    %s36 = sphi 0, %s38
    %s39 = sphi 0, %s36
    %s40 = sphi 0, %s39
    %s56 = sphi 0, %s40
    %s62 = sphi 0, %s64
    %s65 = sphi 0, %s62
    %s66 = sphi 0, %s65
    %s82 = sphi 0, %s66
    %s92 = sphi 0, %s94
    %s95 = sphi 0, %s92
    %s96 = sphi 0, %s95
    %s112 = sphi 0, %s96
    %s122 = sphi 0, %s124
    %s125 = sphi 0, %s122
    %s126 = sphi 0, %s125
    %s142 = sphi 0, %s126
    %s154 = sphi 0, %s156
    %s157 = sphi 0, %s154
    %s158 = sphi 0, %s157
    %s174 = sphi 0, %s158
    %s186 = sphi 0, %s188
    %s189 = sphi 0, %s186
    %s190 = sphi 0, %s189
    %s206 = sphi 0, %s190
    %s216 = sphi 0, %s218
    %s219 = sphi 0, %s216
    %s220 = sphi 0, %s219
    %s236 = sphi 0, %s220
    %s246 = sphi 0, %s248
    %s249 = sphi 0, %s246
    %s250 = sphi 0, %s249
    %s266 = sphi 0, %s250
    %s272 = sphi 0, %s274
    %s275 = sphi 0, %s272
    %s276 = sphi 0, %s275
    %s292 = sphi 0, %s276
  $region4: #{tpu_custom_call.1} parent=0 // loop_header_branch
    %17 = sbr.rel (%p15) target = $region8
  $region5: #{tpu_custom_call.1} parent=0 // loop_body
    %s19 = ssub.s32 %s14, 1
    %s20 = ssub.s32 %s14, 2
    %s27 = sadd.s32 1, %s22
    %p28 = scmp.ge.s32.totalorder %s27, 2
    %s29 = scalar_select %p28, 0, %s27
    %s30 = sadd.s32 1, %s21
    %s31 = scalar_select %p28, %s30, %s21
    %p32 = scmp.ge.s32.totalorder %s31, 5
    %s33 = scalar_select %p32, 0, %s31
    %s34 = ssub.s32 %s21, %s33
    %p35 = scmp.eq.s32.totalorder %s34, 0
    %s37 = sadd.s32 %s36, 1
    %s38 = scalar_select %p35, %s36, %s37
    %p41 = pneg %p35
    %p42 = scmp.eq.s32.totalorder %s14, 9
    %p43 = por %p41, %p42
    %p44 = scmp.ne.s32.totalorder %s36, %s39
    %p45 = scmp.eq.s32.totalorder %s14, 0
    %p46 = por %p44, %p45
    %p47 = scmp.ne.s32.totalorder %s36, %s39
    %p48 = scmp.eq.s32.totalorder %s19, 9
    %p49 = por %p47, %p48
    %p50 = scmp.ne.s32.totalorder %s39, %s40
    %p51 = scmp.eq.s32.totalorder %s19, 0
    %p52 = por %p50, %p51
    %p53 = scmp.ne.s32.totalorder %s39, %s40
    %p54 = scmp.eq.s32.totalorder %s20, 9
    %p55 = por %p53, %p54
    %p57 = scmp.ne.s32.totalorder %s40, %s56
    %p58 = scmp.eq.s32.totalorder %s20, 0
    %p59 = por %p57, %p58
    %s60 = ssub.s32 %s21, %s33
    %p61 = scmp.eq.s32.totalorder %s60, 0
    %s63 = sadd.s32 %s62, 1
    %s64 = scalar_select %p61, %s62, %s63
    %p67 = pneg %p61
    %p68 = scmp.eq.s32.totalorder %s14, 9
    %p69 = por %p67, %p68
    %p70 = scmp.ne.s32.totalorder %s62, %s65
    %p71 = scmp.eq.s32.totalorder %s14, 0
    %p72 = por %p70, %p71
    %p73 = scmp.ne.s32.totalorder %s62, %s65
    %p74 = scmp.eq.s32.totalorder %s19, 9
    %p75 = por %p73, %p74
    %p76 = scmp.ne.s32.totalorder %s65, %s66
    %p77 = scmp.eq.s32.totalorder %s19, 0
    %p78 = por %p76, %p77
    %p79 = scmp.ne.s32.totalorder %s65, %s66
    %p80 = scmp.eq.s32.totalorder %s20, 9
    %p81 = por %p79, %p80
    %p83 = scmp.ne.s32.totalorder %s66, %s82
    %p84 = scmp.eq.s32.totalorder %s20, 0
    %p85 = por %p83, %p84
    %p86 = scmp.lt.s32.totalorder %s22, 0
    %s87 = scalar_select %p86, %s22, 0
    %p88 = scmp.lt.s32.totalorder %s29, 0
    %s89 = scalar_select %p88, %s29, 0
    %s90 = ssub.s32 %s87, %s89
    %p91 = scmp.eq.s32.totalorder %s90, 0
    %s93 = sadd.s32 %s92, 1
    %s94 = scalar_select %p91, %s92, %s93
    %p97 = pneg %p91
    %p98 = scmp.eq.s32.totalorder %s14, 9
    %p99 = por %p97, %p98
    %p100 = scmp.ne.s32.totalorder %s92, %s95
    %p101 = scmp.eq.s32.totalorder %s14, 0
    %p102 = por %p100, %p101
    %p103 = scmp.ne.s32.totalorder %s92, %s95
    %p104 = scmp.eq.s32.totalorder %s19, 9
    %p105 = por %p103, %p104
    %p106 = scmp.ne.s32.totalorder %s95, %s96
    %p107 = scmp.eq.s32.totalorder %s19, 0
    %p108 = por %p106, %p107
    %p109 = scmp.ne.s32.totalorder %s95, %s96
    %p110 = scmp.eq.s32.totalorder %s20, 9
    %p111 = por %p109, %p110
    %p113 = scmp.ne.s32.totalorder %s96, %s112
    %p114 = scmp.eq.s32.totalorder %s20, 0
    %p115 = por %p113, %p114
    %p116 = scmp.lt.s32.totalorder %s22, 1
    %s117 = scalar_select %p116, %s22, 1
    %p118 = scmp.lt.s32.totalorder %s29, 1
    %s119 = scalar_select %p118, %s29, 1
    %s120 = ssub.s32 %s117, %s119
    %p121 = scmp.eq.s32.totalorder %s120, 0
    %s123 = sadd.s32 %s122, 1
    %s124 = scalar_select %p121, %s122, %s123
    %p127 = pneg %p121
    %p128 = scmp.eq.s32.totalorder %s14, 9
    %p129 = por %p127, %p128
    %p130 = scmp.ne.s32.totalorder %s122, %s125
    %p131 = scmp.eq.s32.totalorder %s14, 0
    %p132 = por %p130, %p131
    %p133 = scmp.ne.s32.totalorder %s122, %s125
    %p134 = scmp.eq.s32.totalorder %s19, 9
    %p135 = por %p133, %p134
    %p136 = scmp.ne.s32.totalorder %s125, %s126
    %p137 = scmp.eq.s32.totalorder %s19, 0
    %p138 = por %p136, %p137
    %p139 = scmp.ne.s32.totalorder %s125, %s126
    %p140 = scmp.eq.s32.totalorder %s20, 9
    %p141 = por %p139, %p140
    %p143 = scmp.ne.s32.totalorder %s126, %s142
    %p144 = scmp.eq.s32.totalorder %s20, 0
    %p145 = por %p143, %p144
    %p146 = scmp.lt.s32.totalorder %s22, 0
    %s147 = scalar_select %p146, %s22, 0
    %p148 = scmp.lt.s32.totalorder %s29, 0
    %s149 = scalar_select %p148, %s29, 0
    %s150 = ssub.s32 %s21, %s33
    %s151 = ssub.s32 %s147, %s149
    %s152 = sor.u32 %s150, %s151
    %p153 = scmp.eq.s32.totalorder %s152, 0
    %s155 = sadd.s32 %s154, 1
    %s156 = scalar_select %p153, %s154, %s155
    %p159 = pneg %p153
    %p160 = scmp.eq.s32.totalorder %s14, 9
    %p161 = por %p159, %p160
    %p162 = scmp.ne.s32.totalorder %s154, %s157
    %p163 = scmp.eq.s32.totalorder %s14, 0
    %p164 = por %p162, %p163
    %p165 = scmp.ne.s32.totalorder %s154, %s157
    %p166 = scmp.eq.s32.totalorder %s19, 9
    %p167 = por %p165, %p166
    %p168 = scmp.ne.s32.totalorder %s157, %s158
    %p169 = scmp.eq.s32.totalorder %s19, 0
    %p170 = por %p168, %p169
    %p171 = scmp.ne.s32.totalorder %s157, %s158
    %p172 = scmp.eq.s32.totalorder %s20, 9
    %p173 = por %p171, %p172
    %p175 = scmp.ne.s32.totalorder %s158, %s174
    %p176 = scmp.eq.s32.totalorder %s20, 0
    %p177 = por %p175, %p176
    %p178 = scmp.lt.s32.totalorder %s22, 1
    %s179 = scalar_select %p178, %s22, 1
    %p180 = scmp.lt.s32.totalorder %s29, 1
    %s181 = scalar_select %p180, %s29, 1
    %s182 = ssub.s32 %s21, %s33
    %s183 = ssub.s32 %s179, %s181
    %s184 = sor.u32 %s182, %s183
    %p185 = scmp.eq.s32.totalorder %s184, 0
    %s187 = sadd.s32 %s186, 1
    %s188 = scalar_select %p185, %s186, %s187
    %p191 = pneg %p185
    %p192 = scmp.eq.s32.totalorder %s14, 9
    %p193 = por %p191, %p192
    %p194 = scmp.ne.s32.totalorder %s186, %s189
    %p195 = scmp.eq.s32.totalorder %s14, 0
    %p196 = por %p194, %p195
    %p197 = scmp.ne.s32.totalorder %s186, %s189
    %p198 = scmp.eq.s32.totalorder %s19, 9
    %p199 = por %p197, %p198
    %p200 = scmp.ne.s32.totalorder %s189, %s190
    %p201 = scmp.eq.s32.totalorder %s19, 0
    %p202 = por %p200, %p201
    %p203 = scmp.ne.s32.totalorder %s189, %s190
    %p204 = scmp.eq.s32.totalorder %s20, 9
    %p205 = por %p203, %p204
    %p207 = scmp.ne.s32.totalorder %s190, %s206
    %p208 = scmp.eq.s32.totalorder %s20, 0
    %p209 = por %p207, %p208
    %p210 = scmp.lt.s32.totalorder %s22, 0
    %s211 = scalar_select %p210, %s22, 0
    %p212 = scmp.lt.s32.totalorder %s29, 0
    %s213 = scalar_select %p212, %s29, 0
    %s214 = ssub.s32 %s211, %s213
    %p215 = scmp.eq.s32.totalorder %s214, 0
    %s217 = sadd.s32 %s216, 1
    %s218 = scalar_select %p215, %s216, %s217
    %p221 = pneg %p215
    %p222 = scmp.eq.s32.totalorder %s14, 9
    %p223 = por %p221, %p222
    %p224 = scmp.ne.s32.totalorder %s216, %s219
    %p225 = scmp.eq.s32.totalorder %s14, 0
    %p226 = por %p224, %p225
    %p227 = scmp.ne.s32.totalorder %s216, %s219
    %p228 = scmp.eq.s32.totalorder %s19, 9
    %p229 = por %p227, %p228
    %p230 = scmp.ne.s32.totalorder %s219, %s220
    %p231 = scmp.eq.s32.totalorder %s19, 0
    %p232 = por %p230, %p231
    %p233 = scmp.ne.s32.totalorder %s219, %s220
    %p234 = scmp.eq.s32.totalorder %s20, 9
    %p235 = por %p233, %p234
    %p237 = scmp.ne.s32.totalorder %s220, %s236
    %p238 = scmp.eq.s32.totalorder %s20, 0
    %p239 = por %p237, %p238
    %p240 = scmp.lt.s32.totalorder %s22, 1
    %s241 = scalar_select %p240, %s22, 1
    %p242 = scmp.lt.s32.totalorder %s29, 1
    %s243 = scalar_select %p242, %s29, 1
    %s244 = ssub.s32 %s241, %s243
    %p245 = scmp.eq.s32.totalorder %s244, 0
    %s247 = sadd.s32 %s246, 1
    %s248 = scalar_select %p245, %s246, %s247
    %p251 = pneg %p245
    %p252 = scmp.eq.s32.totalorder %s14, 9
    %p253 = por %p251, %p252
    %p254 = scmp.ne.s32.totalorder %s246, %s249
    %p255 = scmp.eq.s32.totalorder %s14, 0
    %p256 = por %p254, %p255
    %p257 = scmp.ne.s32.totalorder %s246, %s249
    %p258 = scmp.eq.s32.totalorder %s19, 9
    %p259 = por %p257, %p258
    %p260 = scmp.ne.s32.totalorder %s249, %s250
    %p261 = scmp.eq.s32.totalorder %s19, 0
    %p262 = por %p260, %p261
    %p263 = scmp.ne.s32.totalorder %s249, %s250
    %p264 = scmp.eq.s32.totalorder %s20, 9
    %p265 = por %p263, %p264
    %p267 = scmp.ne.s32.totalorder %s250, %s266
    %p268 = scmp.eq.s32.totalorder %s20, 0
    %p269 = por %p267, %p268
    %s270 = ssub.s32 %s21, %s33
    %p271 = scmp.eq.s32.totalorder %s270, 0
    %s273 = sadd.s32 %s272, 1
    %s274 = scalar_select %p271, %s272, %s273
    %p277 = pneg %p271
    %p278 = scmp.eq.s32.totalorder %s14, 9
    %p279 = por %p277, %p278
    %p280 = scmp.ne.s32.totalorder %s272, %s275
    %p281 = scmp.eq.s32.totalorder %s14, 0
    %p282 = por %p280, %p281
    %p283 = scmp.ne.s32.totalorder %s272, %s275
    %p284 = scmp.eq.s32.totalorder %s19, 9
    %p285 = por %p283, %p284
    %p286 = scmp.ne.s32.totalorder %s275, %s276
    %p287 = scmp.eq.s32.totalorder %s19, 0
    %p288 = por %p286, %p287
    %p289 = scmp.ne.s32.totalorder %s275, %s276
    %p290 = scmp.eq.s32.totalorder %s20, 9
    %p291 = por %p289, %p290
    %p293 = scmp.ne.s32.totalorder %s276, %s292
    %p294 = scmp.eq.s32.totalorder %s20, 0
    %p295 = por %p293, %p294
    %p296 = scmp.le.s32.totalorder 1, %s14
    %p297 = scmp.lt.s32.totalorder %s14, 11
    %p298 = pnand %p296, %p297
    %p299 = pneg %p298
    // Predicated region
    $region9: #{tpu_custom_call.1} parent=5 // pred_check
      _
    $region10: #{tpu_custom_call.1} parent=5 // pred_check_branch
      %301 = sbr.rel (%p298) target = $region12
    $region11: #{tpu_custom_call.1} parent=5 // pred_region
      %s302 = ssub.s32 %s14, 1
    $region12: #{tpu_custom_call.1} parent=5 // pred_fallthru
      _
    %p303 = scmp.lt.s32.totalorder %s14, 10
    // Predicated region
    $region13: #{tpu_custom_call.1} parent=5 // pred_check
      %p304 = pneg %p303
    $region14: #{tpu_custom_call.1} parent=5 // pred_check_branch
      %306 = sbr.rel (%p304) target = $region16
    $region15: #{tpu_custom_call.1} parent=5 // pred_region
      // Predicated region
      $region17: #{tpu_custom_call.1} parent=15 // pred_check
        %p307 = pneg %p46
      $region18: #{tpu_custom_call.1} parent=15 // pred_check_branch
        %309 = sbr.rel (%p307) target = $region20
      $region19: #{tpu_custom_call.1} parent=15 // pred_region
        %s310 = smul.u32 4, %s21
        %p311 = scmp.lt.s32.totalorder %s310, 19
        %s312 = scalar_select %p311, %s310, 19
        %s313 = smul.addr %s312, 8
        %s314 = scalar_lea.vmem %s0, %s313
        %s315 = smul.u32 4, %s21
      $region20: #{tpu_custom_call.1} parent=15 // pred_fallthru
        _
      // Predicated region
      $region21: #{tpu_custom_call.1} parent=15 // pred_check
        %p316 = pneg %p72
      $region22: #{tpu_custom_call.1} parent=15 // pred_check_branch
        %318 = sbr.rel (%p316) target = $region24
      $region23: #{tpu_custom_call.1} parent=15 // pred_region
        %s319 = smul.u32 4, %s21
        %p320 = scmp.lt.s32.totalorder %s319, 19
        %s321 = scalar_select %p320, %s319, 19
        %s322 = smul.addr %s321, 8
        %s323 = scalar_lea.vmem %s1, %s322
        %s324 = smul.u32 4, %s21
      $region24: #{tpu_custom_call.1} parent=15 // pred_fallthru
        _
      // Predicated region
      $region25: #{tpu_custom_call.1} parent=15 // pred_check
        %p325 = pneg %p102
      $region26: #{tpu_custom_call.1} parent=15 // pred_check_branch
        %327 = sbr.rel (%p325) target = $region28
      $region27: #{tpu_custom_call.1} parent=15 // pred_region
        %p328 = scmp.lt.s32.totalorder %s22, 0
        %s329 = scalar_select %p328, %s22, 0
        %p330 = scmp.lt.s32.totalorder %s329, 0
        %s331 = scalar_select %p330, %s329, 0
        %s332 = scalar_lea.vmem %s2, %s331
        %p333 = scmp.lt.s32.totalorder %s22, 0
        %s334 = scalar_select %p333, %s22, 0
      $region28: #{tpu_custom_call.1} parent=15 // pred_fallthru
        _
      // Predicated region
      $region29: #{tpu_custom_call.1} parent=15 // pred_check
        %p335 = pneg %p132
      $region30: #{tpu_custom_call.1} parent=15 // pred_check_branch
        %337 = sbr.rel (%p335) target = $region32
      $region31: #{tpu_custom_call.1} parent=15 // pred_region
        %p338 = scmp.lt.s32.totalorder %s22, 1
        %s339 = scalar_select %p338, %s22, 1
        %p340 = scmp.lt.s32.totalorder %s339, 1
        %s341 = scalar_select %p340, %s339, 1
        %s342 = scalar_lea.vmem %s3, %s341
        %p343 = scmp.lt.s32.totalorder %s22, 1
        %s344 = scalar_select %p343, %s22, 1
      $region32: #{tpu_custom_call.1} parent=15 // pred_fallthru
        _
      // Predicated region
      $region33: #{tpu_custom_call.1} parent=15 // pred_check
        %p345 = pneg %p164
      $region34: #{tpu_custom_call.1} parent=15 // pred_check_branch
        %347 = sbr.rel (%p345) target = $region36
      $region35: #{tpu_custom_call.1} parent=15 // pred_region
        %p348 = scmp.lt.s32.totalorder %s22, 0
        %s349 = scalar_select %p348, %s22, 0
        %p350 = scmp.lt.s32.totalorder %s21, 4
        %s351 = scalar_select %p350, %s21, 4
        %p352 = scmp.lt.s32.totalorder %s349, 0
        %s353 = scalar_select %p352, %s349, 0
        %s354 = sadd.s32 %s353, %s351
        %s355 = smul.addr %s354, 8
        %s356 = scalar_lea.vmem %s4, %s355
        %p357 = scmp.lt.s32.totalorder %s22, 0
        %s358 = scalar_select %p357, %s22, 0
      $region36: #{tpu_custom_call.1} parent=15 // pred_fallthru
        _
      // Predicated region
      $region37: #{tpu_custom_call.1} parent=15 // pred_check
        %p359 = pneg %p196
      $region38: #{tpu_custom_call.1} parent=15 // pred_check_branch
        %361 = sbr.rel (%p359) target = $region40
      $region39: #{tpu_custom_call.1} parent=15 // pred_region
        %p362 = scmp.lt.s32.totalorder %s22, 1
        %s363 = scalar_select %p362, %s22, 1
        %p364 = scmp.lt.s32.totalorder %s21, 4
        %s365 = scalar_select %p364, %s21, 4
        %p366 = scmp.lt.s32.totalorder %s363, 1
        %s367 = scalar_select %p366, %s363, 1
        %s368 = smul.addr %s365, 2
        %s369 = sadd.s32 %s367, %s368
        %s370 = smul.addr %s369, 8
        %s371 = scalar_lea.vmem %s5, %s370
        %p372 = scmp.lt.s32.totalorder %s22, 1
        %s373 = scalar_select %p372, %s22, 1
      $region40: #{tpu_custom_call.1} parent=15 // pred_fallthru
        _
      // Predicated region
      $region41: #{tpu_custom_call.1} parent=15 // pred_check
        %p374 = pneg %p226
      $region42: #{tpu_custom_call.1} parent=15 // pred_check_branch
        %376 = sbr.rel (%p374) target = $region44
      $region43: #{tpu_custom_call.1} parent=15 // pred_region
        %p377 = scmp.lt.s32.totalorder %s22, 0
        %s378 = scalar_select %p377, %s22, 0
        %s379 = smul.u32 6, %s378
        %p380 = scmp.lt.s32.totalorder %s379, 5
        %s381 = scalar_select %p380, %s379, 5
        %s382 = smul.addr %s381, 8
        %s383 = scalar_lea.vmem %s6, %s382
        %p384 = scmp.lt.s32.totalorder %s22, 0
        %s385 = scalar_select %p384, %s22, 0
        %s386 = smul.u32 6, %s385
      $region44: #{tpu_custom_call.1} parent=15 // pred_fallthru
        _
      // Predicated region
      $region45: #{tpu_custom_call.1} parent=15 // pred_check
        %p387 = pneg %p256
      $region46: #{tpu_custom_call.1} parent=15 // pred_check_branch
        %389 = sbr.rel (%p387) target = $region48
      $region47: #{tpu_custom_call.1} parent=15 // pred_region
        %p390 = scmp.lt.s32.totalorder %s22, 1
        %s391 = scalar_select %p390, %s22, 1
        %s392 = smul.u32 16, %s391
        %p393 = scmp.lt.s32.totalorder %s392, 31
        %s394 = scalar_select %p393, %s392, 31
        %s395 = smul.addr %s394, 8
        %s396 = scalar_lea.vmem %s7, %s395
        %p397 = scmp.lt.s32.totalorder %s22, 1
        %s398 = scalar_select %p397, %s22, 1
        %s399 = smul.u32 16, %s398
      $region48: #{tpu_custom_call.1} parent=15 // pred_fallthru
        _
    $region16: #{tpu_custom_call.1} parent=5 // pred_fallthru
      _
    %p400 = scmp.le.s32.totalorder 1, %s14
    %p401 = scmp.lt.s32.totalorder %s14, 11
    %p402 = pnand %p400, %p401
    %p403 = pneg %p402
    // Predicated region
    $region49: #{tpu_custom_call.1} parent=5 // pred_check
      _
    $region50: #{tpu_custom_call.1} parent=5 // pred_check_branch
      %405 = sbr.rel (%p402) target = $region52
    $region51: #{tpu_custom_call.1} parent=5 // pred_region
      %s406 = ssub.s32 %s14, 1
      %s407 = smul.u32 4, %s23
      %p408 = scmp.lt.s32.totalorder %s407, 19
      %s409 = scalar_select %p408, %s407, 19
      %s410 = smul.addr %s409, 8
      %s411 = scalar_lea.vmem %s0, %s410
      %p412 = pneg %p52
      %p413 = pneg %p49
      %s414 = smul.u32 4, %s23
      %p415 = scmp.lt.s32.totalorder %s414, 19
      %s416 = scalar_select %p415, %s414, 19
      %s417 = smul.addr %s416, 8
      %s418 = scalar_lea.vmem %s1, %s417
      %p419 = pneg %p78
      %p420 = pneg %p75
      %p421 = scmp.lt.s32.totalorder %s24, 0
      %s422 = scalar_select %p421, %s24, 0
      %p423 = scmp.lt.s32.totalorder %s422, 0
      %s424 = scalar_select %p423, %s422, 0
      %s425 = scalar_lea.vmem %s2, %s424
      %p426 = pneg %p108
      %p427 = pneg %p105
      %p428 = scmp.lt.s32.totalorder %s24, 1
      %s429 = scalar_select %p428, %s24, 1
      %p430 = scmp.lt.s32.totalorder %s429, 1
      %s431 = scalar_select %p430, %s429, 1
      %s432 = scalar_lea.vmem %s3, %s431
      %p433 = pneg %p138
      %p434 = pneg %p135
      %p435 = scmp.lt.s32.totalorder %s24, 0
      %s436 = scalar_select %p435, %s24, 0
      %p437 = scmp.lt.s32.totalorder %s23, 4
      %s438 = scalar_select %p437, %s23, 4
      %p439 = scmp.lt.s32.totalorder %s436, 0
      %s440 = scalar_select %p439, %s436, 0
      %s441 = sadd.s32 %s440, %s438
      %s442 = smul.addr %s441, 8
      %s443 = scalar_lea.vmem %s4, %s442
      %p444 = pneg %p170
      %p445 = pneg %p167
      %p446 = scmp.lt.s32.totalorder %s24, 1
      %s447 = scalar_select %p446, %s24, 1
      %p448 = scmp.lt.s32.totalorder %s23, 4
      %s449 = scalar_select %p448, %s23, 4
      %p450 = scmp.lt.s32.totalorder %s447, 1
      %s451 = scalar_select %p450, %s447, 1
      %s452 = smul.addr %s449, 2
      %s453 = sadd.s32 %s451, %s452
      %s454 = smul.addr %s453, 8
      %s455 = scalar_lea.vmem %s5, %s454
      %p456 = pneg %p202
      %p457 = pneg %p199
      %p458 = scmp.lt.s32.totalorder %s24, 0
      %s459 = scalar_select %p458, %s24, 0
      %s460 = smul.u32 6, %s459
      %p461 = scmp.lt.s32.totalorder %s460, 5
      %s462 = scalar_select %p461, %s460, 5
      %s463 = smul.addr %s462, 8
      %s464 = scalar_lea.vmem %s6, %s463
      %p465 = pneg %p232
      %p466 = pneg %p229
      %p467 = scmp.lt.s32.totalorder %s24, 1
      %s468 = scalar_select %p467, %s24, 1
      %s469 = smul.u32 16, %s468
      %p470 = scmp.lt.s32.totalorder %s469, 31
      %s471 = scalar_select %p470, %s469, 31
      %s472 = smul.addr %s471, 8
      %s473 = scalar_lea.vmem %s7, %s472
      %p474 = pneg %p262
      %p475 = pneg %p259
      %p476 = pneg %p288
      %p477 = pneg %p285
      %s478 = smul.u32 4, %s23
      %p479 = scmp.lt.s32.totalorder %s478, 19
      %s480 = scalar_select %p479, %s478, 19
      %s481 = smul.addr %s480, 8
      %s482 = scalar_lea.vmem %s8, %s481
      %s483 = smul.u32 4, %s23
      %p484 = scmp.lt.s32.totalorder %s483, 19
      %s485 = scalar_select %p484, %s483, 19
      %s486 = smul.addr %s485, 8
      %s487 = scalar_lea.vmem %s0, %s486
      %s488 = smul.u32 4, %s23
      %s489 = smul.u32 4, %s23
      %p490 = scmp.lt.s32.totalorder %s489, 19
      %s491 = scalar_select %p490, %s489, 19
      %s492 = smul.addr %s491, 8
      %s493 = scalar_lea.vmem %s1, %s492
      %s494 = smul.u32 4, %s23
      %p495 = scmp.lt.s32.totalorder %s24, 0
      %s496 = scalar_select %p495, %s24, 0
      %p497 = scmp.lt.s32.totalorder %s496, 0
      %s498 = scalar_select %p497, %s496, 0
      %s499 = scalar_lea.vmem %s2, %s498
      %p500 = scmp.lt.s32.totalorder %s24, 0
      %s501 = scalar_select %p500, %s24, 0
      %p502 = scmp.lt.s32.totalorder %s24, 1
      %s503 = scalar_select %p502, %s24, 1
      %p504 = scmp.lt.s32.totalorder %s503, 1
      %s505 = scalar_select %p504, %s503, 1
      %s506 = scalar_lea.vmem %s3, %s505
      %p507 = scmp.lt.s32.totalorder %s24, 1
      %s508 = scalar_select %p507, %s24, 1
      %p509 = scmp.lt.s32.totalorder %s24, 0
      %s510 = scalar_select %p509, %s24, 0
      %p511 = scmp.lt.s32.totalorder %s23, 4
      %s512 = scalar_select %p511, %s23, 4
      %p513 = scmp.lt.s32.totalorder %s510, 0
      %s514 = scalar_select %p513, %s510, 0
      %s515 = sadd.s32 %s514, %s512
      %s516 = smul.addr %s515, 8
      %s517 = scalar_lea.vmem %s4, %s516
      %p518 = scmp.lt.s32.totalorder %s24, 0
      %s519 = scalar_select %p518, %s24, 0
      %p520 = scmp.lt.s32.totalorder %s24, 1
      %s521 = scalar_select %p520, %s24, 1
      %p522 = scmp.lt.s32.totalorder %s23, 4
      %s523 = scalar_select %p522, %s23, 4
      %p524 = scmp.lt.s32.totalorder %s521, 1
      %s525 = scalar_select %p524, %s521, 1
      %s526 = smul.addr %s523, 2
      %s527 = sadd.s32 %s525, %s526
      %s528 = smul.addr %s527, 8
      %s529 = scalar_lea.vmem %s5, %s528
      %p530 = scmp.lt.s32.totalorder %s24, 1
      %s531 = scalar_select %p530, %s24, 1
      %p532 = scmp.lt.s32.totalorder %s24, 0
      %s533 = scalar_select %p532, %s24, 0
      %s534 = smul.u32 6, %s533
      %p535 = scmp.lt.s32.totalorder %s534, 5
      %s536 = scalar_select %p535, %s534, 5
      %s537 = smul.addr %s536, 8
      %s538 = scalar_lea.vmem %s6, %s537
      %p539 = scmp.lt.s32.totalorder %s24, 0
      %s540 = scalar_select %p539, %s24, 0
      %s541 = smul.u32 6, %s540
      %p542 = scmp.lt.s32.totalorder %s24, 1
      %s543 = scalar_select %p542, %s24, 1
      %s544 = smul.u32 16, %s543
      %p545 = scmp.lt.s32.totalorder %s544, 31
      %s546 = scalar_select %p545, %s544, 31
      %s547 = smul.addr %s546, 8
      %s548 = scalar_lea.vmem %s7, %s547
      %p549 = scmp.lt.s32.totalorder %s24, 1
      %s550 = scalar_select %p549, %s24, 1
      %s551 = smul.u32 16, %s550
      %s552 = smul.u32 4, %s23
      %p553 = scmp.lt.s32.totalorder %s552, 19
      %s554 = scalar_select %p553, %s552, 19
      %s555 = smul.addr %s554, 8
      %s556 = scalar_lea.vmem %s8, %s555
      %s557 = smul.u32 4, %s23
      %p558 = scmp.eq.s32.totalorder %s24, 0
      // Predicated region
      $region53: #{tpu_custom_call.1} parent=51 // pred_check
        %p559 = pneg %p558
      $region54: #{tpu_custom_call.1} parent=51 // pred_check_branch
        %561 = sbr.rel (%p559) target = $region56
      $region55: #{tpu_custom_call.1} parent=51 // pred_region
        %vm562 = vcmask 261120
        %563 = vst.msk [vmem:[#allocation2] sm:$0xff] %vm562, 0.0
        %564 = vst.msk [vmem:[#allocation2 + $0x8] sm:$0xff] %vm562, 0.0
        %565 = vst.msk [vmem:[#allocation2 + $0x10] sm:$0xff] %vm562, 0.0
        %566 = vst.msk [vmem:[#allocation2 + $0x18] sm:$0xff] %vm562, 0.0
        %567 = vst.msk [vmem:[#allocation3] sm:$0xff] %vm562, 0.0
        %568 = vst.msk [vmem:[#allocation3 + $0x8] sm:$0xff] %vm562, 0.0
        %569 = vst.msk [vmem:[#allocation3 + $0x10] sm:$0xff] %vm562, 0.0
        %570 = vst.msk [vmem:[#allocation3 + $0x18] sm:$0xff] %vm562, 0.0
        %vm571 = vcmask 7168
        %572 = vst.msk [vmem:[#allocation4] sm:$0xff] %vm571, 0.0
        %573 = vst.msk [vmem:[#allocation4 + $0x8] sm:$0xff] %vm571, 0.0
        %574 = vst.msk [vmem:[#allocation4 + $0x10] sm:$0xff] %vm571, 0.0
        %575 = vst.msk [vmem:[#allocation4 + $0x18] sm:$0xff] %vm571, 0.0
        %576 = vst.msk [vmem:[#allocation5] sm:$0xff] %vm571, 0.0
        %577 = vst.msk [vmem:[#allocation5 + $0x8] sm:$0xff] %vm571, 0.0
        %578 = vst.msk [vmem:[#allocation5 + $0x10] sm:$0xff] %vm571, 0.0
        %579 = vst.msk [vmem:[#allocation5 + $0x18] sm:$0xff] %vm571, 0.0
        %580 = vst.msk [vmem:[#allocation6] sm:$0xff] %vm571, 0.0
        %581 = vst.msk [vmem:[#allocation6 + $0x8] sm:$0xff] %vm571, 0.0
        %582 = vst.msk [vmem:[#allocation6 + $0x10] sm:$0xff] %vm571, 0.0
        %583 = vst.msk [vmem:[#allocation6 + $0x18] sm:$0xff] %vm571, 0.0
        %584 = vst.msk [vmem:[#allocation7] sm:$0xff] %vm571, 0.0
        %585 = vst.msk [vmem:[#allocation7 + $0x8] sm:$0xff] %vm571, 0.0
        %586 = vst.msk [vmem:[#allocation7 + $0x10] sm:$0xff] %vm571, 0.0
        %587 = vst.msk [vmem:[#allocation7 + $0x18] sm:$0xff] %vm571, 0.0
      $region56: #{tpu_custom_call.1} parent=51 // pred_fallthru
        _
      %p588 = scmp.lt.s32.totalorder %s24, 1
      // Predicated region
      $region57: #{tpu_custom_call.1} parent=51 // pred_check
        %p589 = pneg %p588
      $region58: #{tpu_custom_call.1} parent=51 // pred_check_branch
        %591 = sbr.rel (%p589) target = $region60
      $region59: #{tpu_custom_call.1} parent=51 // pred_region
        %v592 = vld [vmem:[%s517] sm:$0xff]
        %v593 = vunpack.c.0.s8 %v592
        %v594 = vunpack.c.1.s8 %v592
        %v595 = vunpack.c.2.s8 %v592
        %v596 = vunpack.c.3.s8 %v592
        %v597 = vcvt.s32.f32 %v593
        %v598 = vcvt.s32.f32 %v594
        %v599 = vcvt.s32.f32 %v595
        %v600 = vcvt.s32.f32 %v596
        %v601 = vld [vmem:[%s487] sm:$0xff]
        %v602 = vld [vmem:[%s487 + $0x8] sm:$0xff]
        %v603 = vld [vmem:[%s487 + $0x10] sm:$0xff]
        %v604 = vld [vmem:[%s487 + $0x18] sm:$0xff]
        %v605 = vld [vmem:[%s499] sm:$0x1]
        %607 = vset.pattern.permute.xlu0 0
        %608 = vperm.xlu0 %607, %v601
        %v609 = vpop.permute.xlu0 %608
        %612 = vset.pattern.permute.xlu0 0
        %613 = vperm.xlu0 %612, %v602
        %v614 = vpop.permute.xlu0 %613
        %617 = vset.pattern.permute.xlu0 0
        %618 = vperm.xlu0 %617, %v603
        %v619 = vpop.permute.xlu0 %618
        %622 = vset.pattern.permute.xlu0 0
        %623 = vperm.xlu0 %622, %v604
        %v624 = vpop.permute.xlu0 %623
        %v627 = vlaneseq
        %v628 = vshrl.u32 %v627, 7
        %v629 = vsub.s32 0, %v628
        %v630 = vrot.slane %v605, %v629
        %v632 = vadd.f32 %v609, %v630
        %v633 = vadd.f32 %v614, %v630
        %v634 = vadd.f32 %v619, %v630
        %v635 = vadd.f32 %v624, %v630
        %vm636 = vcmp.gt.f32.partialorder %v632, 0.0
        %vm637 = vcmp.gt.f32.partialorder %v633, 0.0
        %vm638 = vcmp.gt.f32.partialorder %v634, 0.0
        %vm639 = vcmp.gt.f32.partialorder %v635, 0.0
        %v640 = vmul.f32 %v632, 0.01
        %v641 = vmul.f32 %v633, 0.01
        %v642 = vmul.f32 %v634, 0.01
        %v643 = vmul.f32 %v635, 0.01
        %v644 = vsel %vm636, %v632, %v640
        %v645 = vsel %vm637, %v633, %v641
        %v646 = vsel %vm638, %v634, %v642
        %v647 = vsel %vm639, %v635, %v643
        %v648 = vmul.f32 %v644, 1.442695
        %v649 = vpow.pop %v648
        %v650 = vmul.f32 %v645, 1.442695
        %v651 = vpow.pop %v650
        %v652 = vmul.f32 %v646, 1.442695
        %v653 = vpow.pop %v652
        %v654 = vmul.f32 %v647, 1.442695
        %v655 = vpow.pop %v654
        %v656 = vmul.f32 %v649, %v597
        %v657 = vmul.f32 %v651, %v598
        %v658 = vmul.f32 %v653, %v599
        %v659 = vmul.f32 %v655, %v600
        %v660 = vld [vmem:[#allocation2] sm:$0xff]
        %v661 = vld [vmem:[#allocation2 + $0x8] sm:$0xff]
        %v662 = vld [vmem:[#allocation2 + $0x10] sm:$0xff]
        %v663 = vld [vmem:[#allocation2 + $0x18] sm:$0xff]
        %v664 = vld [vmem:[%s538] sm:$0xff]
        %v665 = vld [vmem:[%s538 + $0x8] sm:$0xff]
        %v666 = vld [vmem:[%s538 + $0x10] sm:$0xff]
        %v667 = vld [vmem:[%s538 + $0x18] sm:$0xff]
        %v668 = vld [vmem:[%s538 + $0x20] sm:$0xff]
        %v669 = vld [vmem:[%s538 + $0x28] sm:$0xff]
        %vm670 = vcmask 392192
        %v672 = vsel %vm670, %v656, 0
        %v675 = vsel %vm670, %v657, 0
        %v678 = vsel %vm670, %v658, 0
        %v681 = vsel %vm670, %v659, 0
        %683 = vmatprep.subr.mxu0 0.0
        %684 = vmatpush1.msra.mxu0 0.0
        %685 = vmatprep.subr.mxu0 0.0
        %686 = vmatpush1.msra.mxu0 0.0
        %687 = vmatprep.subr.mxu0 0.0
        %688 = vmatpush1.msra.mxu0 0.0
        %689 = vmatprep.subr.mxu0 0.0
        %690 = vmatpush1.msra.mxu0 0.0
        %691 = vmatprep.subr.mxu0 0.0
        %692 = vmatpush1.msra.mxu0 0.0
        %693 = vmatprep.subr.mxu0 0.0
        %694 = vmatpush1.msra.mxu0 0.0
        %695 = vmatprep.subr.mxu0 0.0
        %696 = vmatpush1.msra.mxu0 0.0
        %697 = vmatprep.subr.mxu0 0.0
        %698 = vmatpush1.msra.mxu0 0.0
        %699 = vmatprep.subr.mxu0 0.0
        %700 = vmatpush1.msra.mxu0 0.0
        %701 = vmatprep.subr.mxu0 0.0
        %702 = vmatpush1.msra.mxu0 0.0
        %703 = vmatprep.subr.mxu0 0.0
        %704 = vmatpush1.msra.mxu0 %v669
        %705 = vmatprep.subr.mxu0 0.0
        %706 = vmatpush1.msra.mxu0 %v668
        %707 = vmatprep.subr.mxu0 0.0
        %708 = vmatpush1.msra.mxu0 %v667
        %709 = vmatprep.subr.mxu0 0.0
        %710 = vmatpush1.msra.mxu0 %v666
        %711 = vmatprep.subr.mxu0 0.0
        %712 = vmatpush1.msra.mxu0 %v665
        %713 = vmatprep.subr.mxu0 0.0
        %714 = vmatpush1.msra.mxu0 %v664
        %715 = vmatprep.subr.mxu0 0.0
        %716 = vmatpush2.msra.mxu0 0.0
        %717 = vmatprep.subr.mxu0 0.0
        %718 = vmatpush2.msra.mxu0 0.0
        %719 = vmatprep.subr.mxu0 0.0
        %720 = vmatpush2.msra.mxu0 0.0
        %721 = vmatprep.subr.mxu0 0.0
        %722 = vmatpush2.msra.mxu0 0.0
        %723 = vmatprep.subr.mxu0 0.0
        %724 = vmatpush2.msra.mxu0 0.0
        %725 = vmatprep.subr.mxu0 0.0
        %726 = vmatpush2.msra.mxu0 0.0
        %727 = vmatprep.subr.mxu0 0.0
        %728 = vmatpush2.msra.mxu0 0.0
        %729 = vmatprep.subr.mxu0 0.0
        %730 = vmatpush2.msra.mxu0 0.0
        %731 = vmatprep.subr.mxu0 0.0
        %732 = vmatpush2.msra.mxu0 0.0
        %733 = vmatprep.subr.mxu0 0.0
        %734 = vmatpush2.msra.mxu0 0.0
        %735 = vmatprep.subr.mxu0 0.0
        %736 = vmatpush2.msra.mxu0 0.0
        %737 = vmatprep.subr.mxu0 0.0
        %738 = vmatpush2.msra.mxu0 0.0
        %739 = vmatprep.subr.mxu0 0.0
        %740 = vmatpush2.msra.mxu0 0.0
        %741 = vmatprep.subr.mxu0 0.0
        %742 = vmatpush2.msra.mxu0 0.0
        %743 = vmatprep.subr.mxu0 0.0
        %744 = vmatpush2.msra.mxu0 0.0
        %745 = vmatprep.subr.mxu0 0.0
        %746 = vmatpush2.msra.mxu0 0.0
        %747 = vmatprep.mubr.f32.mxu0 0.0
        %748 = vmatmul.mubr.f32.gmra.mxu0 %v672
        %v749 = vpop.f32.mrf.mxu0
        %v750 = vadd.f32 0.0, %v749
        %v751 = vpop.f32.mrf.mxu0
        %752 = vmatprep.mubr.f32.mxu0 0.0
        %753 = vmatmul.mubr.f32.gmra.mxu0 %v675
        %v754 = vpop.f32.mrf.mxu0
        %v755 = vadd.f32 0.0, %v754
        %v756 = vpop.f32.mrf.mxu0
        %757 = vmatprep.mubr.f32.mxu0 0.0
        %758 = vmatmul.mubr.f32.gmra.mxu0 %v678
        %v759 = vpop.f32.mrf.mxu0
        %v760 = vadd.f32 0.0, %v759
        %v761 = vpop.f32.mrf.mxu0
        %762 = vmatprep.mubr.f32.mxu0 0.0
        %763 = vmatmul.mubr.f32.gmra.mxu0 %v681
        %v764 = vpop.f32.mrf.mxu0
        %v765 = vadd.f32 0.0, %v764
        %v766 = vpop.f32.mrf.mxu0
        %767 = vdwg.mxu0
        %v768 = vadd.f32 %v660, %v750
        %v769 = vadd.f32 %v661, %v755
        %v770 = vadd.f32 %v662, %v760
        %v771 = vadd.f32 %v663, %v765
        %vm772 = vcmask 261120
        %773 = vst.msk [vmem:[#allocation2] sm:$0xff] %vm772, %v768
        %774 = vst.msk [vmem:[#allocation2 + $0x8] sm:$0xff] %vm772, %v769
        %775 = vst.msk [vmem:[#allocation2 + $0x10] sm:$0xff] %vm772, %v770
        %776 = vst.msk [vmem:[#allocation2 + $0x18] sm:$0xff] %vm772, %v771
        %v777 = vld [vmem:[#allocation4] sm:$0xff]
        %v778 = vld [vmem:[#allocation4 + $0x8] sm:$0xff]
        %v779 = vld [vmem:[#allocation4 + $0x10] sm:$0xff]
        %v780 = vld [vmem:[#allocation4 + $0x18] sm:$0xff]
        %v781 = vsel %vm670, %v656, 0.0
        %782 = vadd.xlane.f32.xlu0 %v781
        %v783 = vpop.xlane.xlu0 %782
        %v784 = vsel %vm670, %v657, 0.0
        %785 = vadd.xlane.f32.xlu0 %v784
        %v786 = vpop.xlane.xlu0 %785
        %v787 = vsel %vm670, %v658, 0.0
        %788 = vadd.xlane.f32.xlu0 %v787
        %v789 = vpop.xlane.xlu0 %788
        %v790 = vsel %vm670, %v659, 0.0
        %791 = vadd.xlane.f32.xlu0 %v790
        %v792 = vpop.xlane.xlu0 %791
        %v793 = vadd.f32 %v777, %v783
        %v794 = vadd.f32 %v778, %v786
        %v795 = vadd.f32 %v779, %v789
        %v796 = vadd.f32 %v780, %v792
        %vm797 = vcmask 7168
        %798 = vst.msk [vmem:[#allocation4] sm:$0xff] %vm797, %v793
        %799 = vst.msk [vmem:[#allocation4 + $0x8] sm:$0xff] %vm797, %v794
        %800 = vst.msk [vmem:[#allocation4 + $0x10] sm:$0xff] %vm797, %v795
        %801 = vst.msk [vmem:[#allocation4 + $0x18] sm:$0xff] %vm797, %v796
        %v802 = vld [vmem:[#allocation6] sm:$0xff]
        %v803 = vld [vmem:[#allocation6 + $0x8] sm:$0xff]
        %v804 = vld [vmem:[#allocation6 + $0x10] sm:$0xff]
        %v805 = vld [vmem:[#allocation6 + $0x18] sm:$0xff]
        %v806 = vsel %vm670, %v597, 0.0
        %807 = vadd.xlane.f32.xlu0 %v806
        %v808 = vpop.xlane.xlu0 %807
        %v809 = vsel %vm670, %v598, 0.0
        %810 = vadd.xlane.f32.xlu0 %v809
        %v811 = vpop.xlane.xlu0 %810
        %v812 = vsel %vm670, %v599, 0.0
        %813 = vadd.xlane.f32.xlu0 %v812
        %v814 = vpop.xlane.xlu0 %813
        %v815 = vsel %vm670, %v600, 0.0
        %816 = vadd.xlane.f32.xlu0 %v815
        %v817 = vpop.xlane.xlu0 %816
        %v818 = vadd.f32 %v802, %v808
        %v819 = vadd.f32 %v803, %v811
        %v820 = vadd.f32 %v804, %v814
        %v821 = vadd.f32 %v805, %v817
        %822 = vst.msk [vmem:[#allocation6] sm:$0xff] %vm797, %v818
        %823 = vst.msk [vmem:[#allocation6 + $0x8] sm:$0xff] %vm797, %v819
        %824 = vst.msk [vmem:[#allocation6 + $0x10] sm:$0xff] %vm797, %v820
        %825 = vst.msk [vmem:[#allocation6 + $0x18] sm:$0xff] %vm797, %v821
      $region60: #{tpu_custom_call.1} parent=51 // pred_fallthru
        _
      %p826 = scmp.lt.s32.totalorder %s24, 2
      // Predicated region
      $region61: #{tpu_custom_call.1} parent=51 // pred_check
        %p827 = pneg %p826
      $region62: #{tpu_custom_call.1} parent=51 // pred_check_branch
        %829 = sbr.rel (%p827) target = $region64
      $region63: #{tpu_custom_call.1} parent=51 // pred_region
        %v830 = vld [vmem:[%s529] sm:$0xff]
        %v831 = vunpack.c.0.s8 %v830
        %v832 = vunpack.c.1.s8 %v830
        %v833 = vunpack.c.2.s8 %v830
        %v834 = vunpack.c.3.s8 %v830
        %v835 = vcvt.s32.f32 %v831
        %v836 = vcvt.s32.f32 %v832
        %v837 = vcvt.s32.f32 %v833
        %v838 = vcvt.s32.f32 %v834
        %v839 = vld [vmem:[%s493] sm:$0xff]
        %v840 = vld [vmem:[%s493 + $0x8] sm:$0xff]
        %v841 = vld [vmem:[%s493 + $0x10] sm:$0xff]
        %v842 = vld [vmem:[%s493 + $0x18] sm:$0xff]
        %v843 = vld [vmem:[%s506] sm:$0x1]
        %845 = vset.pattern.permute.xlu0 0
        %846 = vperm.xlu0 %845, %v839
        %v847 = vpop.permute.xlu0 %846
        %850 = vset.pattern.permute.xlu0 0
        %851 = vperm.xlu0 %850, %v840
        %v852 = vpop.permute.xlu0 %851
        %855 = vset.pattern.permute.xlu0 0
        %856 = vperm.xlu0 %855, %v841
        %v857 = vpop.permute.xlu0 %856
        %860 = vset.pattern.permute.xlu0 0
        %861 = vperm.xlu0 %860, %v842
        %v862 = vpop.permute.xlu0 %861
        %v865 = vlaneseq
        %v866 = vshrl.u32 %v865, 7
        %v867 = vsub.s32 0, %v866
        %v868 = vrot.slane %v843, %v867
        %v870 = vadd.f32 %v847, %v868
        %v871 = vadd.f32 %v852, %v868
        %v872 = vadd.f32 %v857, %v868
        %v873 = vadd.f32 %v862, %v868
        %vm874 = vcmp.gt.f32.partialorder %v870, 0.0
        %vm875 = vcmp.gt.f32.partialorder %v871, 0.0
        %vm876 = vcmp.gt.f32.partialorder %v872, 0.0
        %vm877 = vcmp.gt.f32.partialorder %v873, 0.0
        %v878 = vmul.f32 %v870, 0.01
        %v879 = vmul.f32 %v871, 0.01
        %v880 = vmul.f32 %v872, 0.01
        %v881 = vmul.f32 %v873, 0.01
        %v882 = vsel %vm874, %v870, %v878
        %v883 = vsel %vm875, %v871, %v879
        %v884 = vsel %vm876, %v872, %v880
        %v885 = vsel %vm877, %v873, %v881
        %v886 = vmul.f32 %v882, 1.442695
        %v887 = vpow.pop %v886
        %v888 = vmul.f32 %v883, 1.442695
        %v889 = vpow.pop %v888
        %v890 = vmul.f32 %v884, 1.442695
        %v891 = vpow.pop %v890
        %v892 = vmul.f32 %v885, 1.442695
        %v893 = vpow.pop %v892
        %v894 = vmul.f32 %v887, %v835
        %v895 = vmul.f32 %v889, %v836
        %v896 = vmul.f32 %v891, %v837
        %v897 = vmul.f32 %v893, %v838
        %v898 = vld [vmem:[#allocation3] sm:$0xff]
        %v899 = vld [vmem:[#allocation3 + $0x8] sm:$0xff]
        %v900 = vld [vmem:[#allocation3 + $0x10] sm:$0xff]
        %v901 = vld [vmem:[#allocation3 + $0x18] sm:$0xff]
        %v902 = vld [vmem:[%s548] sm:$0xff]
        %v903 = vld [vmem:[%s548 + $0x8] sm:$0xff]
        %v904 = vld [vmem:[%s548 + $0x10] sm:$0xff]
        %v905 = vld [vmem:[%s548 + $0x18] sm:$0xff]
        %v906 = vld [vmem:[%s548 + $0x20] sm:$0xff]
        %v907 = vld [vmem:[%s548 + $0x28] sm:$0xff]
        %v908 = vld [vmem:[%s548 + $0x30] sm:$0xff]
        %v909 = vld [vmem:[%s548 + $0x38] sm:$0xff]
        %v910 = vld [vmem:[%s548 + $0x40] sm:$0xff]
        %v911 = vld [vmem:[%s548 + $0x48] sm:$0xff]
        %v912 = vld [vmem:[%s548 + $0x50] sm:$0xff]
        %v913 = vld [vmem:[%s548 + $0x58] sm:$0xff]
        %v914 = vld [vmem:[%s548 + $0x60] sm:$0xff]
        %v915 = vld [vmem:[%s548 + $0x68] sm:$0xff]
        %v916 = vld [vmem:[%s548 + $0x70] sm:$0xff]
        %v917 = vld [vmem:[%s548 + $0x78] sm:$0xff]
        %918 = vmatprep.subr.mxu0 0.0
        %919 = vmatpush1.msra.mxu0 %v917
        %920 = vmatprep.subr.mxu0 0.0
        %921 = vmatpush1.msra.mxu0 %v916
        %922 = vmatprep.subr.mxu0 0.0
        %923 = vmatpush1.msra.mxu0 %v915
        %924 = vmatprep.subr.mxu0 0.0
        %925 = vmatpush1.msra.mxu0 %v914
        %926 = vmatprep.subr.mxu0 0.0
        %927 = vmatpush1.msra.mxu0 %v913
        %928 = vmatprep.subr.mxu0 0.0
        %929 = vmatpush1.msra.mxu0 %v912
        %930 = vmatprep.subr.mxu0 0.0
        %931 = vmatpush1.msra.mxu0 %v911
        %932 = vmatprep.subr.mxu0 0.0
        %933 = vmatpush1.msra.mxu0 %v910
        %934 = vmatprep.subr.mxu0 0.0
        %935 = vmatpush1.msra.mxu0 %v909
        %936 = vmatprep.subr.mxu0 0.0
        %937 = vmatpush1.msra.mxu0 %v908
        %938 = vmatprep.subr.mxu0 0.0
        %939 = vmatpush1.msra.mxu0 %v907
        %940 = vmatprep.subr.mxu0 0.0
        %941 = vmatpush1.msra.mxu0 %v906
        %942 = vmatprep.subr.mxu0 0.0
        %943 = vmatpush1.msra.mxu0 %v905
        %944 = vmatprep.subr.mxu0 0.0
        %945 = vmatpush1.msra.mxu0 %v904
        %946 = vmatprep.subr.mxu0 0.0
        %947 = vmatpush1.msra.mxu0 %v903
        %948 = vmatprep.subr.mxu0 0.0
        %949 = vmatpush1.msra.mxu0 %v902
        %950 = vmatprep.subr.mxu0 0.0
        %951 = vmatpush2.msra.mxu0 0.0
        %952 = vmatprep.subr.mxu0 0.0
        %953 = vmatpush2.msra.mxu0 0.0
        %954 = vmatprep.subr.mxu0 0.0
        %955 = vmatpush2.msra.mxu0 0.0
        %956 = vmatprep.subr.mxu0 0.0
        %957 = vmatpush2.msra.mxu0 0.0
        %958 = vmatprep.subr.mxu0 0.0
        %959 = vmatpush2.msra.mxu0 0.0
        %960 = vmatprep.subr.mxu0 0.0
        %961 = vmatpush2.msra.mxu0 0.0
        %962 = vmatprep.subr.mxu0 0.0
        %963 = vmatpush2.msra.mxu0 0.0
        %964 = vmatprep.subr.mxu0 0.0
        %965 = vmatpush2.msra.mxu0 0.0
        %966 = vmatprep.subr.mxu0 0.0
        %967 = vmatpush2.msra.mxu0 0.0
        %968 = vmatprep.subr.mxu0 0.0
        %969 = vmatpush2.msra.mxu0 0.0
        %970 = vmatprep.subr.mxu0 0.0
        %971 = vmatpush2.msra.mxu0 0.0
        %972 = vmatprep.subr.mxu0 0.0
        %973 = vmatpush2.msra.mxu0 0.0
        %974 = vmatprep.subr.mxu0 0.0
        %975 = vmatpush2.msra.mxu0 0.0
        %976 = vmatprep.subr.mxu0 0.0
        %977 = vmatpush2.msra.mxu0 0.0
        %978 = vmatprep.subr.mxu0 0.0
        %979 = vmatpush2.msra.mxu0 0.0
        %980 = vmatprep.subr.mxu0 0.0
        %981 = vmatpush2.msra.mxu0 0.0
        %982 = vmatprep.mubr.f32.mxu0 0.0
        %983 = vmatmul.mubr.f32.gmra.mxu0 %v894
        %v984 = vpop.f32.mrf.mxu0
        %v985 = vadd.f32 0.0, %v984
        %v986 = vpop.f32.mrf.mxu0
        %987 = vmatprep.mubr.f32.mxu0 0.0
        %988 = vmatmul.mubr.f32.gmra.mxu0 %v895
        %v989 = vpop.f32.mrf.mxu0
        %v990 = vadd.f32 0.0, %v989
        %v991 = vpop.f32.mrf.mxu0
        %992 = vmatprep.mubr.f32.mxu0 0.0
        %993 = vmatmul.mubr.f32.gmra.mxu0 %v896
        %v994 = vpop.f32.mrf.mxu0
        %v995 = vadd.f32 0.0, %v994
        %v996 = vpop.f32.mrf.mxu0
        %997 = vmatprep.mubr.f32.mxu0 0.0
        %998 = vmatmul.mubr.f32.gmra.mxu0 %v897
        %v999 = vpop.f32.mrf.mxu0
        %v1000 = vadd.f32 0.0, %v999
        %v1001 = vpop.f32.mrf.mxu0
        %1002 = vdwg.mxu0
        %v1003 = vadd.f32 %v898, %v985
        %v1004 = vadd.f32 %v899, %v990
        %v1005 = vadd.f32 %v900, %v995
        %v1006 = vadd.f32 %v901, %v1000
        %vm1007 = vcmask 261120
        %1008 = vst.msk [vmem:[#allocation3] sm:$0xff] %vm1007, %v1003
        %1009 = vst.msk [vmem:[#allocation3 + $0x8] sm:$0xff] %vm1007, %v1004
        %1010 = vst.msk [vmem:[#allocation3 + $0x10] sm:$0xff] %vm1007, %v1005
        %1011 = vst.msk [vmem:[#allocation3 + $0x18] sm:$0xff] %vm1007, %v1006
        %v1012 = vld [vmem:[#allocation5] sm:$0xff]
        %v1013 = vld [vmem:[#allocation5 + $0x8] sm:$0xff]
        %v1014 = vld [vmem:[#allocation5 + $0x10] sm:$0xff]
        %v1015 = vld [vmem:[#allocation5 + $0x18] sm:$0xff]
        %1016 = vadd.xlane.f32.xlu0 %v894
        %v1017 = vpop.xlane.xlu0 %1016
        %1018 = vadd.xlane.f32.xlu0 %v895
        %v1019 = vpop.xlane.xlu0 %1018
        %1020 = vadd.xlane.f32.xlu0 %v896
        %v1021 = vpop.xlane.xlu0 %1020
        %1022 = vadd.xlane.f32.xlu0 %v897
        %v1023 = vpop.xlane.xlu0 %1022
        %v1024 = vadd.f32 %v1012, %v1017
        %v1025 = vadd.f32 %v1013, %v1019
        %v1026 = vadd.f32 %v1014, %v1021
        %v1027 = vadd.f32 %v1015, %v1023
        %vm1028 = vcmask 7168
        %1029 = vst.msk [vmem:[#allocation5] sm:$0xff] %vm1028, %v1024
        %1030 = vst.msk [vmem:[#allocation5 + $0x8] sm:$0xff] %vm1028, %v1025
        %1031 = vst.msk [vmem:[#allocation5 + $0x10] sm:$0xff] %vm1028, %v1026
        %1032 = vst.msk [vmem:[#allocation5 + $0x18] sm:$0xff] %vm1028, %v1027
        %v1033 = vld [vmem:[#allocation7] sm:$0xff]
        %v1034 = vld [vmem:[#allocation7 + $0x8] sm:$0xff]
        %v1035 = vld [vmem:[#allocation7 + $0x10] sm:$0xff]
        %v1036 = vld [vmem:[#allocation7 + $0x18] sm:$0xff]
        %1037 = vadd.xlane.f32.xlu0 %v835
        %v1038 = vpop.xlane.xlu0 %1037
        %1039 = vadd.xlane.f32.xlu0 %v836
        %v1040 = vpop.xlane.xlu0 %1039
        %1041 = vadd.xlane.f32.xlu0 %v837
        %v1042 = vpop.xlane.xlu0 %1041
        %1043 = vadd.xlane.f32.xlu0 %v838
        %v1044 = vpop.xlane.xlu0 %1043
        %v1045 = vadd.f32 %v1033, %v1038
        %v1046 = vadd.f32 %v1034, %v1040
        %v1047 = vadd.f32 %v1035, %v1042
        %v1048 = vadd.f32 %v1036, %v1044
        %1049 = vst.msk [vmem:[#allocation7] sm:$0xff] %vm1028, %v1045
        %1050 = vst.msk [vmem:[#allocation7 + $0x8] sm:$0xff] %vm1028, %v1046
        %1051 = vst.msk [vmem:[#allocation7 + $0x10] sm:$0xff] %vm1028, %v1047
        %1052 = vst.msk [vmem:[#allocation7 + $0x18] sm:$0xff] %vm1028, %v1048
      $region64: #{tpu_custom_call.1} parent=51 // pred_fallthru
        _
      %p1053 = scmp.eq.s32.totalorder %s24, 1
      // Predicated region
      $region65: #{tpu_custom_call.1} parent=51 // pred_check
        %p1054 = pneg %p1053
      $region66: #{tpu_custom_call.1} parent=51 // pred_check_branch
        %1056 = sbr.rel (%p1054) target = $region68
      $region67: #{tpu_custom_call.1} parent=51 // pred_region
        %v1057 = vld [vmem:[#allocation4] sm:$0xff]
        %v1058 = vld [vmem:[#allocation4 + $0x8] sm:$0xff]
        %v1059 = vld [vmem:[#allocation4 + $0x10] sm:$0xff]
        %v1060 = vld [vmem:[#allocation4 + $0x18] sm:$0xff]
        %v1061 = vld [vmem:[#allocation6] sm:$0xff]
        %v1062 = vld [vmem:[#allocation6 + $0x8] sm:$0xff]
        %v1063 = vld [vmem:[#allocation6 + $0x10] sm:$0xff]
        %v1064 = vld [vmem:[#allocation6 + $0x18] sm:$0xff]
        %v1065 = vmul.f32 %v1057, %v1061
        %v1066 = vmul.f32 %v1058, %v1062
        %v1067 = vmul.f32 %v1059, %v1063
        %v1068 = vmul.f32 %v1060, %v1064
        %vm1069 = vcmp.eq.f32.partialorder %v1065, 0.0
        %vm1070 = vcmp.eq.f32.partialorder %v1066, 0.0
        %vm1071 = vcmp.eq.f32.partialorder %v1067, 0.0
        %vm1072 = vcmp.eq.f32.partialorder %v1068, 0.0
        %v1073 = vsel %vm1069, 1.0, %v1065
        %v1074 = vsel %vm1070, 1.0, %v1066
        %v1075 = vsel %vm1071, 1.0, %v1067
        %v1076 = vsel %vm1072, 1.0, %v1068
        %v1077 = vrcp.pop %v1073
        %v1078 = vrcp.pop %v1074
        %v1079 = vrcp.pop %v1075
        %v1080 = vrcp.pop %v1076
        %v1081 = vld [vmem:[#allocation5] sm:$0xff]
        %v1082 = vld [vmem:[#allocation5 + $0x8] sm:$0xff]
        %v1083 = vld [vmem:[#allocation5 + $0x10] sm:$0xff]
        %v1084 = vld [vmem:[#allocation5 + $0x18] sm:$0xff]
        %v1085 = vld [vmem:[#allocation7] sm:$0xff]
        %v1086 = vld [vmem:[#allocation7 + $0x8] sm:$0xff]
        %v1087 = vld [vmem:[#allocation7 + $0x10] sm:$0xff]
        %v1088 = vld [vmem:[#allocation7 + $0x18] sm:$0xff]
        %v1089 = vmul.f32 %v1081, %v1085
        %v1090 = vmul.f32 %v1082, %v1086
        %v1091 = vmul.f32 %v1083, %v1087
        %v1092 = vmul.f32 %v1084, %v1088
        %vm1093 = vcmp.eq.f32.partialorder %v1089, 0.0
        %vm1094 = vcmp.eq.f32.partialorder %v1090, 0.0
        %vm1095 = vcmp.eq.f32.partialorder %v1091, 0.0
        %vm1096 = vcmp.eq.f32.partialorder %v1092, 0.0
        %v1097 = vsel %vm1093, 1.0, %v1089
        %v1098 = vsel %vm1094, 1.0, %v1090
        %v1099 = vsel %vm1095, 1.0, %v1091
        %v1100 = vsel %vm1096, 1.0, %v1092
        %v1101 = vrcp.pop %v1097
        %v1102 = vrcp.pop %v1098
        %v1103 = vrcp.pop %v1099
        %v1104 = vrcp.pop %v1100
        %v1105 = vld [vmem:[#allocation2] sm:$0xff]
        %v1106 = vld [vmem:[#allocation2 + $0x8] sm:$0xff]
        %v1107 = vld [vmem:[#allocation2 + $0x10] sm:$0xff]
        %v1108 = vld [vmem:[#allocation2 + $0x18] sm:$0xff]
        %1110 = vset.pattern.permute.xlu0 0
        %1111 = vperm.xlu0 %1110, %v1077
        %v1112 = vpop.permute.xlu0 %1111
        %1115 = vset.pattern.permute.xlu0 0
        %1116 = vperm.xlu0 %1115, %v1078
        %v1117 = vpop.permute.xlu0 %1116
        %1120 = vset.pattern.permute.xlu0 0
        %1121 = vperm.xlu0 %1120, %v1079
        %v1122 = vpop.permute.xlu0 %1121
        %1125 = vset.pattern.permute.xlu0 0
        %1126 = vperm.xlu0 %1125, %v1080
        %v1127 = vpop.permute.xlu0 %1126
        %v1129 = vmul.f32 %v1105, %v1112
        %v1130 = vmul.f32 %v1106, %v1117
        %v1131 = vmul.f32 %v1107, %v1122
        %v1132 = vmul.f32 %v1108, %v1127
        %vm1133 = vcmp.gt.f32.partialorder %v1129, 0.0
        %vm1134 = vcmp.gt.f32.partialorder %v1130, 0.0
        %vm1135 = vcmp.gt.f32.partialorder %v1131, 0.0
        %vm1136 = vcmp.gt.f32.partialorder %v1132, 0.0
        %v1137 = vmul.f32 %v1129, 0.01
        %v1138 = vmul.f32 %v1130, 0.01
        %v1139 = vmul.f32 %v1131, 0.01
        %v1140 = vmul.f32 %v1132, 0.01
        %v1141 = vsel %vm1133, %v1129, %v1137
        %v1142 = vsel %vm1134, %v1130, %v1138
        %v1143 = vsel %vm1135, %v1131, %v1139
        %v1144 = vsel %vm1136, %v1132, %v1140
        %vm1145 = vcmask 261120
        %1146 = vst.msk [vmem:[%s556] sm:$0xff] %vm1145, %v1141
        %1147 = vst.msk [vmem:[%s556 + $0x8] sm:$0xff] %vm1145, %v1142
        %1148 = vst.msk [vmem:[%s556 + $0x10] sm:$0xff] %vm1145, %v1143
        %1149 = vst.msk [vmem:[%s556 + $0x18] sm:$0xff] %vm1145, %v1144
        %v1150 = vld [vmem:[#allocation3] sm:$0xff]
        %v1151 = vld [vmem:[#allocation3 + $0x8] sm:$0xff]
        %v1152 = vld [vmem:[#allocation3 + $0x10] sm:$0xff]
        %v1153 = vld [vmem:[#allocation3 + $0x18] sm:$0xff]
        %1155 = vset.pattern.permute.xlu0 0
        %1156 = vperm.xlu0 %1155, %v1101
        %v1157 = vpop.permute.xlu0 %1156
        %1160 = vset.pattern.permute.xlu0 0
        %1161 = vperm.xlu0 %1160, %v1102
        %v1162 = vpop.permute.xlu0 %1161
        %1165 = vset.pattern.permute.xlu0 0
        %1166 = vperm.xlu0 %1165, %v1103
        %v1167 = vpop.permute.xlu0 %1166
        %1170 = vset.pattern.permute.xlu0 0
        %1171 = vperm.xlu0 %1170, %v1104
        %v1172 = vpop.permute.xlu0 %1171
        %v1174 = vmul.f32 %v1150, %v1157
        %v1175 = vmul.f32 %v1151, %v1162
        %v1176 = vmul.f32 %v1152, %v1167
        %v1177 = vmul.f32 %v1153, %v1172
        %vm1178 = vcmp.gt.f32.partialorder %v1174, 0.0
        %vm1179 = vcmp.gt.f32.partialorder %v1175, 0.0
        %vm1180 = vcmp.gt.f32.partialorder %v1176, 0.0
        %vm1181 = vcmp.gt.f32.partialorder %v1177, 0.0
        %v1182 = vmul.f32 %v1174, 0.01
        %v1183 = vmul.f32 %v1175, 0.01
        %v1184 = vmul.f32 %v1176, 0.01
        %v1185 = vmul.f32 %v1177, 0.01
        %v1186 = vsel %vm1178, %v1174, %v1182
        %v1187 = vsel %vm1179, %v1175, %v1183
        %v1188 = vsel %vm1180, %v1176, %v1184
        %v1189 = vsel %vm1181, %v1177, %v1185
        %1194 = vrot.lane.b32.xlu0 %v1186, 32
        %v1195 = vpop.permute.xlu0 %1194
        %1196 = vrot.lane.b32.xlu0 %v1187, 32
        %v1197 = vpop.permute.xlu0 %1196
        %1198 = vrot.lane.b32.xlu0 %v1188, 32
        %v1199 = vpop.permute.xlu0 %1198
        %1200 = vrot.lane.b32.xlu0 %v1189, 32
        %v1201 = vpop.permute.xlu0 %1200
        %vm1206 = vcmask 523520
        %1207 = vst.msk [vmem:[%s556] sm:$0xff] %vm1206, %v1195
        %1208 = vst.msk [vmem:[%s556 + $0x8] sm:$0xff] %vm1206, %v1197
        %1209 = vst.msk [vmem:[%s556 + $0x10] sm:$0xff] %vm1206, %v1199
        %1210 = vst.msk [vmem:[%s556 + $0x18] sm:$0xff] %vm1206, %v1201
      $region68: #{tpu_custom_call.1} parent=51 // pred_fallthru
        _
      %s1211 = smul.u32 4, %s23
      %p1212 = scmp.lt.s32.totalorder %s1211, 19
      %s1213 = scalar_select %p1212, %s1211, 19
      %s1214 = smul.addr %s1213, 8
      %s1215 = scalar_lea.vmem %s8, %s1214
      // Predicated region
      $region69: #{tpu_custom_call.1} parent=51 // pred_check
        %p1216 = pneg %p285
      $region70: #{tpu_custom_call.1} parent=51 // pred_check_branch
        %1218 = sbr.rel (%p1216) target = $region72
      $region71: #{tpu_custom_call.1} parent=51 // pred_region
        %s1219 = smul.u32 4, %s23
      $region72: #{tpu_custom_call.1} parent=51 // pred_fallthru
        _
    $region52: #{tpu_custom_call.1} parent=5 // pred_fallthru
      _
    %p1220 = scmp.le.s32.totalorder 2, %s14
    // Predicated region
    $region73: #{tpu_custom_call.1} parent=5 // pred_check
      %p1221 = pneg %p1220
    $region74: #{tpu_custom_call.1} parent=5 // pred_check_branch
      %1223 = sbr.rel (%p1221) target = $region76
    $region75: #{tpu_custom_call.1} parent=5 // pred_region
      %s1224 = ssub.s32 %s14, 2
      // Predicated region
      $region77: #{tpu_custom_call.1} parent=75 // pred_check
        %p1225 = pneg %p291
      $region78: #{tpu_custom_call.1} parent=75 // pred_check_branch
        %1227 = sbr.rel (%p1225) target = $region80
      $region79: #{tpu_custom_call.1} parent=75 // pred_region
        %s1228 = smul.u32 4, %s25
        %p1229 = scmp.lt.s32.totalorder %s1228, 19
        %s1230 = scalar_select %p1229, %s1228, 19
        %s1231 = smul.addr %s1230, 8
        %s1232 = scalar_lea.vmem %s8, %s1231
      $region80: #{tpu_custom_call.1} parent=75 // pred_fallthru
        _
    $region76: #{tpu_custom_call.1} parent=5 // pred_fallthru
      _
  $region6: #{tpu_custom_call.1} parent=0 // loop_footer
    %s18 = sadd.s32 1, %s14
  $region7: #{tpu_custom_call.1} parent=0 // loop_footer_branch
    %13 = sbr.rel target = $region3
  $region8: #{tpu_custom_call.1} parent=0 // loop_exit
    _

</llo_original>
